<compile_context>
chip_gen: v7x
topology: tpu7x:2x2x1
jax: 0.10.0
libtpu: 0.0.40
codegen_flags: <defaults>
</compile_context>

<pallas_src>
import functools

import jax
import jax.numpy as jnp
from jax import lax
from jax.experimental import pallas as pl
from jax.experimental.pallas import tpu as pltpu

_HIGH = lax.Precision.HIGHEST


def _full_spec(arr):
    """Whole-array VMEM block (re-used across the batch grid)."""
    nd = arr.ndim
    return pl.BlockSpec(arr.shape, lambda b, _nd=nd: (0,) * _nd)


# ---------------------------------------------------------------------------
# DWSconv stage: DW 3x3 stride-2 (no bias) -> BN -> ReLU -> 1x1 (no bias) -> BN -> ReLU
# ---------------------------------------------------------------------------
def dwsconv_kernel(pee_ref, peo_ref, poe_ref, poo_ref,
                   wdw_ref, s1_ref, t1_ref, wpw_ref, s2_ref, t2_ref,
                   o_ref, *, Ho, Wo, Cin, Cout):
    # parity planes of the zero-padded input:  xp[2i+rh, 2j+rw] == planes[rh][rw][i, j]
    planes = ((pee_ref[0].astype(jnp.float32), peo_ref[0].astype(jnp.float32)),
              (poe_ref[0].astype(jnp.float32), poo_ref[0].astype(jnp.float32)))
    wdw = wdw_ref[...].astype(jnp.float32)                    # (3, 3, Cin)

    acc = jnp.zeros((Ho, Wo, Cin), jnp.float32)
    for kh in range(3):
        qh, rh = divmod(kh, 2)
        for kw in range(3):
            qw, rw = divmod(kw, 2)
            tap = planes[rh][rw][qh:qh + Ho, qw:qw + Wo, :]
            acc = acc + tap * wdw[kh, kw, :]

    y = jnp.maximum(acc * s1_ref[0] + t1_ref[0], 0.0)          # BN1 + ReLU
    y = jnp.dot(y.reshape(Ho * Wo, Cin), wpw_ref[...],         # 1x1 conv on the MXU
                precision=_HIGH, preferred_element_type=jnp.float32)
    y = jnp.maximum(y * s2_ref[0] + t2_ref[0], 0.0)            # BN2 + ReLU
    o_ref[0] = y.reshape(Ho, Wo, Cout).astype(o_ref.dtype)


def _dwsconv_stage(x_nhwc, p):
    B, H, W, Cin = x_nhwc.shape
    assert H % 2 == 0 and W % 2 == 0, "even spatial dims expected"
    Cout = p["pw_w"].shape[0]
    Ho, Wo = H // 2, W // 2

    # Wrapper-side layout plumbing: pad by 1 and split into 4 parity planes so
    # the kernel only needs contiguous (unstrided) slices.
    xp = jnp.pad(x_nhwc, ((0, 0), (1, 1), (1, 1), (0, 0)))
    planes = [xp[:, rh::2, rw::2, :] for rh in (0, 1) for rw in (0, 1)]

    eps = 1e-5

    def fold(bn):   # eval-mode BatchNorm folded into scale/shift
        s = bn["gamma"] * lax.rsqrt(bn["var"] + eps)
        return s.reshape(1, -1), (bn["beta"] - bn["mean"] * s).reshape(1, -1)

    s1, t1 = fold(p["bn1"])
    s2, t2 = fold(p["bn2"])
    wdw = p["dw_w"].reshape(Cin, 3, 3).transpose(1, 2, 0)      # (3, 3, Cin)
    wpw = p["pw_w"].reshape(Cout, Cin).T                       # (Cin, Cout)
    weights = (wdw, s1, t1, wpw, s2, t2)

    img_in = pl.BlockSpec((1, Ho + 1, Wo + 1, Cin), lambda b: (b, 0, 0, 0))
    grid_spec = pltpu.PrefetchScalarGridSpec(
        num_scalar_prefetch=0,
        grid=(B,),
        in_specs=[img_in] * 4 + [_full_spec(w) for w in weights],
        out_specs=pl.BlockSpec((1, Ho, Wo, Cout), lambda b: (b, 0, 0, 0)),
    )
    kernel = functools.partial(dwsconv_kernel, Ho=Ho, Wo=Wo, Cin=Cin, Cout=Cout)
    return pl.pallas_call(
        kernel,
        out_shape=jax.ShapeDtypeStruct((B, Ho, Wo, Cout), x_nhwc.dtype),
        grid_spec=grid_spec,
        compiler_params=pltpu.CompilerParams(dimension_semantics=("parallel",)),
    )(*planes, *weights)


# ---------------------------------------------------------------------------
# MLKA stage: LayerNorm -> proj_first -> {LKA3*X3, LKA5*X5, LKA7*X7} gate
#             -> proj_last * scale + shortcut
# ---------------------------------------------------------------------------
_BR_CFG = ((3, 5, 2), (5, 7, 3), (7, 9, 4))   # (k_first, k_second, dilation_second)


def mlka_kernel(*refs, H, W, C, g, eps_ln):
    x_ref, o_ref = refs[0], refs[-1]
    it = iter(refs[1:-1])
    ln_w, ln_b = next(it), next(it)
    a_proj = [(next(it), next(it)) for _ in range(3)]      # proj_first -> a chunks
    x_proj = [(next(it), next(it)) for _ in range(3)]      # proj_first -> x chunks
    branches = [tuple(next(it) for _ in range(8)) for _ in range(3)]
    pl_w = [next(it) for _ in range(3)]                    # proj_last split per branch
    pl_b, scale = next(it), next(it)
    assert next(it, None) is None                          # trace-time sanity check

    x = x_ref[0].astype(jnp.float32)                       # (H, W, C), also shortcut
    # LayerNorm (channels_first in NCHW == channel/lane axis here)
    u = jnp.mean(x, axis=-1, keepdims=True)
    xc = x - u
    var = jnp.mean(xc * xc, axis=-1, keepdims=True)
    xn = xc * lax.rsqrt(var + eps_ln) * ln_w[0] + ln_b[0]
    xn_flat = xn.reshape(H * W, C)

    def dwconv(inp, w_ref, b_ref, k, dil):
        """Depthwise k x k conv with dilation (same padding) on an (H, W, g) slab."""
        pad = (k // 2) * dil
        xp = jnp.zeros((H + 2 * pad, W + 2 * pad, g), jnp.float32)
        xp = xp.at[pad:pad + H, pad:pad + W, :].set(inp)
        wv = w_ref[...].astype(jnp.float32)                # (k, k, g)
        acc = jnp.zeros((H, W, g), jnp.float32) + b_ref[0]
        for kh in range(k):
            for kw in range(k):
                acc = acc + xp[kh * dil:kh * dil + H, kw * dil:kw * dil + W, :] * wv[kh, kw, :]
        return acc

    def matmul(lhs, w_ref, b_ref=None):
        out = jnp.dot(lhs, w_ref[...], precision=_HIGH,
                      preferred_element_type=jnp.float32)
        return out if b_ref is None else out + b_ref[0]

    out_acc = jnp.zeros((H * W, C), jnp.float32) + pl_b[0]
    for i in range(3):
        k1, k2, dil = _BR_CFG[i]
        da_w, da_b, db_w, db_b, pw_w, pw_b, xk_w, xk_b = branches[i]
        a_i = matmul(xn_flat, *a_proj[i]).reshape(H, W, g)         # proj_first (a_i)
        x_i = matmul(xn_flat, *x_proj[i]).reshape(H, W, g)         # proj_first (x chunk)
        t = dwconv(a_i, da_w, da_b, k1, 1)                         # LKA: dw k1
        t = dwconv(t, db_w, db_b, k2, dil)                         # LKA: dw k2, dilated
        t = matmul(t.reshape(H * W, g), pw_w, pw_b).reshape(H, W, g)   # LKA: 1x1
        br = t * dwconv(a_i, xk_w, xk_b, k1, 1)                    # * X_k(a_i)
        gated = (x_i * br).reshape(H * W, g)
        out_acc = out_acc + matmul(gated, pl_w[i])                 # proj_last chunk

    out = out_acc.reshape(H, W, C) * scale[0] + x
    o_ref[0] = out.astype(o_ref.dtype)


def _mlka_stage(x_nhwc, mp, n1, g):
    B, H, W, C = x_nhwc.shape
    pf_w, pf_b = mp["pf"]
    Wpf = pf_w.reshape(2 * n1, C)
    plw, plb = mp["pl"]
    Wpl = plw.reshape(C, n1)

    def dw_t(wb):   # (g,1,k,k) OIHW depthwise -> (k, k, g)
        w, b = wb
        k = w.shape[-1]
        return w.reshape(g, k, k).transpose(1, 2, 0), b.reshape(1, g)

    def pw_t(wb):   # (O,I,1,1) 1x1 conv -> (I, O)
        w, b = wb
        return w.reshape(w.shape[0], w.shape[1]).T, b.reshape(1, -1)

    params = [mp["ln_w"].reshape(1, C), mp["ln_b"].reshape(1, C)]
    for i in range(3):                                     # proj_first -> a chunks
        params += [Wpf[i * g:(i + 1) * g, :].T, pf_b[i * g:(i + 1) * g].reshape(1, g)]
    for i in range(3):                                     # proj_first -> x chunks
        params += [Wpf[n1 + i * g:n1 + (i + 1) * g, :].T,
                   pf_b[n1 + i * g:n1 + (i + 1) * g].reshape(1, g)]
    for da, db, pw, xk in ((mp["k3a"], mp["k3b"], mp["k3c"], mp["x3"]),
                           (mp["k5a"], mp["k5b"], mp["k5c"], mp["x5"]),
                           (mp["k7a"], mp["k7b"], mp["k7c"], mp["x7"])):
        for wb in (dw_t(da), dw_t(db), pw_t(pw), dw_t(xk)):
            params += [wb[0], wb[1]]
    for i in range(3):                                     # proj_last split per branch
        params += [Wpl[:, i * g:(i + 1) * g].T]
    params += [plb.reshape(1, C), mp["scale"].reshape(1, C)]

    img = pl.BlockSpec((1, H, W, C), lambda b: (b, 0, 0, 0))
    grid_spec = pltpu.PrefetchScalarGridSpec(
        num_scalar_prefetch=0,
        grid=(B,),
        in_specs=[img] + [_full_spec(p) for p in params],
        out_specs=img,
    )
    kernel = functools.partial(mlka_kernel, H=H, W=W, C=C, g=g, eps_ln=1e-6)
    return pl.pallas_call(
        kernel,
        out_shape=jax.ShapeDtypeStruct((B, H, W, C), x_nhwc.dtype),
        grid_spec=grid_spec,
        compiler_params=pltpu.CompilerParams(dimension_semantics=("parallel",)),
    )(x_nhwc, *params)


def dwla_pallas(x_nchw, params):
    x = jnp.transpose(x_nchw, (0, 2, 3, 1))                # NCHW -> NHWC
    for p in params["dws"]:
        x = _dwsconv_stage(x, p)
    x = _mlka_stage(x, params["mlka"], params["n1"], params["g"])
    return jnp.transpose(x, (0, 3, 1, 2))                  # NHWC -> NCHW


# ---------------------------------------------------------------------------
# Pure-JAX reference (NCHW) for verification
# ---------------------------------------------------------------------------
def _conv(x, w, b=None, *, stride=1, padding=0, dilation=1, groups=1):
    out = lax.conv_general_dilated(
        x, w, window_strides=(stride, stride),
        padding=[(padding, padding), (padding, padding)],
        rhs_dilation=(dilation, dilation),
        dimension_numbers=("NCHW", "OIHW", "NCHW"),
        feature_group_count=groups, precision=_HIGH)
    if b is not None:
        out = out + b.reshape(1, -1, 1, 1)
    return out


def _bn_eval(x, bn, eps=1e-5):
    s = bn["gamma"] * lax.rsqrt(bn["var"] + eps)
    t = bn["beta"] - bn["mean"] * s
    return x * s.reshape(1, -1, 1, 1) + t.reshape(1, -1, 1, 1)


def _mlka_ref(x, mp, n1, g):
    shortcut = x
    u = x.mean(1, keepdims=True)
    s = ((x - u) ** 2).mean(1, keepdims=True)
    xn = (x - u) / jnp.sqrt(s + 1e-6)
    xn = mp["ln_w"].reshape(1, -1, 1, 1) * xn + mp["ln_b"].reshape(1, -1, 1, 1)
    y = _conv(xn, *mp["pf"])
    a, xb = jnp.split(y, 2, axis=1)
    a1, a2, a3 = a[:, :g], a[:, g:2 * g], a[:, 2 * g:]

    def lka(inp, ca, cb, cc, k1, k2, dil):
        t = _conv(inp, ca[0], ca[1], padding=k1 // 2, groups=g)
        t = _conv(t, cb[0], cb[1], padding=(k2 // 2) * dil, dilation=dil, groups=g)
        return _conv(t, cc[0], cc[1])

    b3 = lka(a1, mp["k3a"], mp["k3b"], mp["k3c"], 3, 5, 2) * _conv(a1, *mp["x3"], padding=1, groups=g)
    b5 = lka(a2, mp["k5a"], mp["k5b"], mp["k5c"], 5, 7, 3) * _conv(a2, *mp["x5"], padding=2, groups=g)
    b7 = lka(a3, mp["k7a"], mp["k7b"], mp["k7c"], 7, 9, 4) * _conv(a3, *mp["x7"], padding=3, groups=g)
    a_out = jnp.concatenate([b3, b5, b7], axis=1)
    out = _conv(xb * a_out, *mp["pl"])
    return out * mp["scale"] + shortcut


def dwla_ref(x, params):
    for p in params["dws"]:
        cin = x.shape[1]
        t = _conv(x, p["dw_w"], stride=2, padding=1, groups=cin)
        t = jax.nn.relu(_bn_eval(t, p["bn1"]))
        t = _conv(t, p["pw_w"])
        x = jax.nn.relu(_bn_eval(t, p["bn2"]))
    return _mlka_ref(x, params["mlka"], params["n1"], params["g"])


# ---------------------------------------------------------------------------
# Deterministic synthetic parameters (shapes follow the PyTorch module)
# ---------------------------------------------------------------------------
def make_params(key, in_channels, depths):
    keys = iter(jax.random.split(key, 128))

    def nrm(shape, s=1.0):
        return s * jax.random.normal(next(keys), shape, jnp.float32)

    dws = []
    c = in_channels
    for _ in range(depths):
        co = 2 * c
        dws.append(dict(
            dw_w=nrm((c, 1, 3, 3), 0.3),
            bn1=dict(gamma=1.0 + nrm((c,), 0.1), beta=nrm((c,), 0.1),
                     mean=nrm((c,), 0.1), var=jnp.abs(nrm((c,), 0.3)) + 0.5),
            pw_w=nrm((co, c, 1, 1), c ** -0.5),
            bn2=dict(gamma=1.0 + nrm((co,), 0.1), beta=nrm((co,), 0.1),
                     mean=nrm((co,), 0.1), var=jnp.abs(nrm((co,), 0.3)) + 0.5),
        ))
        c = co

    n_feats = c
    n1 = -(-n_feats // 3) * 3
    g = n1 // 3

    def dwp(k):
        return (nrm((g, 1, k, k), 1.0 / k), nrm((g,), 0.1))

    def pwp(ci, co):
        return (nrm((co, ci, 1, 1), ci ** -0.5), nrm((co,), 0.1))

    mlka = dict(
        ln_w=1.0 + nrm((n_feats,), 0.1), ln_b=nrm((n_feats,), 0.1),
        scale=nrm((1, n_feats, 1, 1), 0.5),          # random (zeros init would hide bugs)
        pf=pwp(n_feats, 2 * n1),
        k3a=dwp(3), k3b=dwp(5), k3c=pwp(g, g), x3=dwp(3),
        k5a=dwp(5), k5b=dwp(7), k5c=pwp(g, g), x5=dwp(5),
        k7a=dwp(7), k7b=dwp(9), k7c=pwp(g, g), x7=dwp(7),
        pl=pwp(n1, n_feats),
    )
    return dict(dws=dws, mlka=mlka, n_feats=n_feats, n1=n1, g=g)


if __name__ == "__main__":
    B, in_channels, depths, H, W = 2, 4, 2, 16, 16
    key = jax.random.PRNGKey(0)
    kx, kp = jax.random.split(key)
    x = jax.random.normal(kx, (B, in_channels, H, W), jnp.float32)
    params = make_params(kp, in_channels, depths)

    out = jax.block_until_ready(dwla_pallas(x, params))
    ref = jax.block_until_ready(dwla_ref(x, params))

    assert out.shape == ref.shape, (out.shape, ref.shape)
    err = float(jnp.max(jnp.abs(out - ref)))
    assert jnp.allclose(out, ref, atol=5e-3, rtol=5e-3), f"max abs err = {err}"
    print("KERNEL_OK")
</pallas_src>

<mosaic_0001>
module attributes {stable_mosaic.version = 11 : i64} {
  func.func @dwsconv_kernel(%arg0: i32, %arg1: memref<1x9x9x4xf32, #tpu.memory_space<vmem>>, %arg2: memref<1x9x9x4xf32, #tpu.memory_space<vmem>>, %arg3: memref<1x9x9x4xf32, #tpu.memory_space<vmem>>, %arg4: memref<1x9x9x4xf32, #tpu.memory_space<vmem>>, %arg5: memref<3x3x4xf32, #tpu.memory_space<vmem>>, %arg6: memref<1x4xf32, #tpu.memory_space<vmem>>, %arg7: memref<1x4xf32, #tpu.memory_space<vmem>>, %arg8: memref<4x8xf32, #tpu.memory_space<vmem>>, %arg9: memref<1x8xf32, #tpu.memory_space<vmem>>, %arg10: memref<1x8xf32, #tpu.memory_space<vmem>>, %arg11: memref<1x8x8x8xf32, #tpu.memory_space<vmem>>) attributes {dimension_semantics = [#tpu.dimension_semantics<parallel>], iteration_bounds = array<i64: 2>, scalar_prefetch = 0 : i64, scratch_operands = 0 : i64, tpu.core_type = #tpu.core_type<tc>, window_params = [{transform_indices = @transform_0, window_bounds = array<i64: 1, 9, 9, 4>}, {transform_indices = @transform_1, window_bounds = array<i64: 1, 9, 9, 4>}, {transform_indices = @transform_2, window_bounds = array<i64: 1, 9, 9, 4>}, {transform_indices = @transform_3, window_bounds = array<i64: 1, 9, 9, 4>}, {pipeline_mode = #tpu.pipeline_mode<synchronous>, transform_indices = @transform_4, window_bounds = array<i64: 3, 3, 4>}, {pipeline_mode = #tpu.pipeline_mode<synchronous>, transform_indices = @transform_5, window_bounds = array<i64: 1, 4>}, {pipeline_mode = #tpu.pipeline_mode<synchronous>, transform_indices = @transform_6, window_bounds = array<i64: 1, 4>}, {pipeline_mode = #tpu.pipeline_mode<synchronous>, transform_indices = @transform_7, window_bounds = array<i64: 4, 8>}, {pipeline_mode = #tpu.pipeline_mode<synchronous>, transform_indices = @transform_8, window_bounds = array<i64: 1, 8>}, {pipeline_mode = #tpu.pipeline_mode<synchronous>, transform_indices = @transform_9, window_bounds = array<i64: 1, 8>}, {transform_indices = @transform_10, window_bounds = array<i64: 1, 8, 8, 8>}]} {
    %c0 = arith.constant 0 : index
    %c0_0 = arith.constant 0 : index
    %c0_1 = arith.constant 0 : index
    %c0_2 = arith.constant 0 : index
    %0 = vector.load %arg1[%c0, %c0_0, %c0_1, %c0_2] : memref<1x9x9x4xf32, #tpu.memory_space<vmem>>, vector<1x9x9x4xf32>
    %1 = vector.shape_cast %0 : vector<1x9x9x4xf32> to vector<9x9x4xf32>
    %c0_3 = arith.constant 0 : index
    %c0_4 = arith.constant 0 : index
    %c0_5 = arith.constant 0 : index
    %c0_6 = arith.constant 0 : index
    %2 = vector.load %arg2[%c0_3, %c0_4, %c0_5, %c0_6] : memref<1x9x9x4xf32, #tpu.memory_space<vmem>>, vector<1x9x9x4xf32>
    %3 = vector.shape_cast %2 : vector<1x9x9x4xf32> to vector<9x9x4xf32>
    %c0_7 = arith.constant 0 : index
    %c0_8 = arith.constant 0 : index
    %c0_9 = arith.constant 0 : index
    %c0_10 = arith.constant 0 : index
    %4 = vector.load %arg3[%c0_7, %c0_8, %c0_9, %c0_10] : memref<1x9x9x4xf32, #tpu.memory_space<vmem>>, vector<1x9x9x4xf32>
    %5 = vector.shape_cast %4 : vector<1x9x9x4xf32> to vector<9x9x4xf32>
    %c0_11 = arith.constant 0 : index
    %c0_12 = arith.constant 0 : index
    %c0_13 = arith.constant 0 : index
    %c0_14 = arith.constant 0 : index
    %6 = vector.load %arg4[%c0_11, %c0_12, %c0_13, %c0_14] : memref<1x9x9x4xf32, #tpu.memory_space<vmem>>, vector<1x9x9x4xf32>
    %7 = vector.shape_cast %6 : vector<1x9x9x4xf32> to vector<9x9x4xf32>
    %c0_15 = arith.constant 0 : index
    %c0_16 = arith.constant 0 : index
    %c0_17 = arith.constant 0 : index
    %8 = vector.load %arg5[%c0_15, %c0_16, %c0_17] : memref<3x3x4xf32, #tpu.memory_space<vmem>>, vector<3x3x4xf32>
    %cst = arith.constant 0.000000e+00 : f32
    %9 = vector.broadcast %cst : f32 to vector<8x8x4xf32>
    %10 = vector.extract_strided_slice %1 {offsets = [0, 0, 0], sizes = [8, 8, 4], strides = [1, 1, 1]} : vector<9x9x4xf32> to vector<8x8x4xf32>
    %11 = vector.extract_strided_slice %8 {offsets = [0, 0, 0], sizes = [1, 1, 4], strides = [1, 1, 1]} : vector<3x3x4xf32> to vector<1x1x4xf32>
    %12 = vector.shape_cast %11 : vector<1x1x4xf32> to vector<4xf32>
    %13 = vector.shape_cast %12 : vector<4xf32> to vector<1x1x4xf32>
    %14 = vector.broadcast %13 : vector<1x1x4xf32> to vector<8x8x4xf32>
    %15 = arith.mulf %10, %14 : vector<8x8x4xf32>
    %16 = arith.addf %9, %15 : vector<8x8x4xf32>
    %17 = vector.extract_strided_slice %3 {offsets = [0, 0, 0], sizes = [8, 8, 4], strides = [1, 1, 1]} : vector<9x9x4xf32> to vector<8x8x4xf32>
    %18 = vector.extract_strided_slice %8 {offsets = [0, 1, 0], sizes = [1, 1, 4], strides = [1, 1, 1]} : vector<3x3x4xf32> to vector<1x1x4xf32>
    %19 = vector.shape_cast %18 : vector<1x1x4xf32> to vector<4xf32>
    %20 = vector.shape_cast %19 : vector<4xf32> to vector<1x1x4xf32>
    %21 = vector.broadcast %20 : vector<1x1x4xf32> to vector<8x8x4xf32>
    %22 = arith.mulf %17, %21 : vector<8x8x4xf32>
    %23 = arith.addf %16, %22 : vector<8x8x4xf32>
    %24 = vector.extract_strided_slice %1 {offsets = [0, 1, 0], sizes = [8, 8, 4], strides = [1, 1, 1]} : vector<9x9x4xf32> to vector<8x8x4xf32>
    %25 = vector.extract_strided_slice %8 {offsets = [0, 2, 0], sizes = [1, 1, 4], strides = [1, 1, 1]} : vector<3x3x4xf32> to vector<1x1x4xf32>
    %26 = vector.shape_cast %25 : vector<1x1x4xf32> to vector<4xf32>
    %27 = vector.shape_cast %26 : vector<4xf32> to vector<1x1x4xf32>
    %28 = vector.broadcast %27 : vector<1x1x4xf32> to vector<8x8x4xf32>
    %29 = arith.mulf %24, %28 : vector<8x8x4xf32>
    %30 = arith.addf %23, %29 : vector<8x8x4xf32>
    %31 = vector.extract_strided_slice %5 {offsets = [0, 0, 0], sizes = [8, 8, 4], strides = [1, 1, 1]} : vector<9x9x4xf32> to vector<8x8x4xf32>
    %32 = vector.extract_strided_slice %8 {offsets = [1, 0, 0], sizes = [1, 1, 4], strides = [1, 1, 1]} : vector<3x3x4xf32> to vector<1x1x4xf32>
    %33 = vector.shape_cast %32 : vector<1x1x4xf32> to vector<4xf32>
    %34 = vector.shape_cast %33 : vector<4xf32> to vector<1x1x4xf32>
    %35 = vector.broadcast %34 : vector<1x1x4xf32> to vector<8x8x4xf32>
    %36 = arith.mulf %31, %35 : vector<8x8x4xf32>
    %37 = arith.addf %30, %36 : vector<8x8x4xf32>
    %38 = vector.extract_strided_slice %7 {offsets = [0, 0, 0], sizes = [8, 8, 4], strides = [1, 1, 1]} : vector<9x9x4xf32> to vector<8x8x4xf32>
    %39 = vector.extract_strided_slice %8 {offsets = [1, 1, 0], sizes = [1, 1, 4], strides = [1, 1, 1]} : vector<3x3x4xf32> to vector<1x1x4xf32>
    %40 = vector.shape_cast %39 : vector<1x1x4xf32> to vector<4xf32>
    %41 = vector.shape_cast %40 : vector<4xf32> to vector<1x1x4xf32>
    %42 = vector.broadcast %41 : vector<1x1x4xf32> to vector<8x8x4xf32>
    %43 = arith.mulf %38, %42 : vector<8x8x4xf32>
    %44 = arith.addf %37, %43 : vector<8x8x4xf32>
    %45 = vector.extract_strided_slice %5 {offsets = [0, 1, 0], sizes = [8, 8, 4], strides = [1, 1, 1]} : vector<9x9x4xf32> to vector<8x8x4xf32>
    %46 = vector.extract_strided_slice %8 {offsets = [1, 2, 0], sizes = [1, 1, 4], strides = [1, 1, 1]} : vector<3x3x4xf32> to vector<1x1x4xf32>
    %47 = vector.shape_cast %46 : vector<1x1x4xf32> to vector<4xf32>
    %48 = vector.shape_cast %47 : vector<4xf32> to vector<1x1x4xf32>
    %49 = vector.broadcast %48 : vector<1x1x4xf32> to vector<8x8x4xf32>
    %50 = arith.mulf %45, %49 : vector<8x8x4xf32>
    %51 = arith.addf %44, %50 : vector<8x8x4xf32>
    %52 = vector.extract_strided_slice %1 {offsets = [1, 0, 0], sizes = [8, 8, 4], strides = [1, 1, 1]} : vector<9x9x4xf32> to vector<8x8x4xf32>
    %53 = vector.extract_strided_slice %8 {offsets = [2, 0, 0], sizes = [1, 1, 4], strides = [1, 1, 1]} : vector<3x3x4xf32> to vector<1x1x4xf32>
    %54 = vector.shape_cast %53 : vector<1x1x4xf32> to vector<4xf32>
    %55 = vector.shape_cast %54 : vector<4xf32> to vector<1x1x4xf32>
    %56 = vector.broadcast %55 : vector<1x1x4xf32> to vector<8x8x4xf32>
    %57 = arith.mulf %52, %56 : vector<8x8x4xf32>
    %58 = arith.addf %51, %57 : vector<8x8x4xf32>
    %59 = vector.extract_strided_slice %3 {offsets = [1, 0, 0], sizes = [8, 8, 4], strides = [1, 1, 1]} : vector<9x9x4xf32> to vector<8x8x4xf32>
    %60 = vector.extract_strided_slice %8 {offsets = [2, 1, 0], sizes = [1, 1, 4], strides = [1, 1, 1]} : vector<3x3x4xf32> to vector<1x1x4xf32>
    %61 = vector.shape_cast %60 : vector<1x1x4xf32> to vector<4xf32>
    %62 = vector.shape_cast %61 : vector<4xf32> to vector<1x1x4xf32>
    %63 = vector.broadcast %62 : vector<1x1x4xf32> to vector<8x8x4xf32>
    %64 = arith.mulf %59, %63 : vector<8x8x4xf32>
    %65 = arith.addf %58, %64 : vector<8x8x4xf32>
    %66 = vector.extract_strided_slice %1 {offsets = [1, 1, 0], sizes = [8, 8, 4], strides = [1, 1, 1]} : vector<9x9x4xf32> to vector<8x8x4xf32>
    %67 = vector.extract_strided_slice %8 {offsets = [2, 2, 0], sizes = [1, 1, 4], strides = [1, 1, 1]} : vector<3x3x4xf32> to vector<1x1x4xf32>
    %68 = vector.shape_cast %67 : vector<1x1x4xf32> to vector<4xf32>
    %69 = vector.shape_cast %68 : vector<4xf32> to vector<1x1x4xf32>
    %70 = vector.broadcast %69 : vector<1x1x4xf32> to vector<8x8x4xf32>
    %71 = arith.mulf %66, %70 : vector<8x8x4xf32>
    %72 = arith.addf %65, %71 : vector<8x8x4xf32>
    %c0_18 = arith.constant 0 : index
    %c0_19 = arith.constant 0 : index
    %73 = vector.load %arg6[%c0_18, %c0_19] : memref<1x4xf32, #tpu.memory_space<vmem>>, vector<1x4xf32>
    %74 = vector.shape_cast %73 : vector<1x4xf32> to vector<4xf32>
    %75 = vector.shape_cast %74 : vector<4xf32> to vector<1x1x4xf32>
    %76 = vector.broadcast %75 : vector<1x1x4xf32> to vector<8x8x4xf32>
    %77 = arith.mulf %72, %76 : vector<8x8x4xf32>
    %c0_20 = arith.constant 0 : index
    %c0_21 = arith.constant 0 : index
    %78 = vector.load %arg7[%c0_20, %c0_21] : memref<1x4xf32, #tpu.memory_space<vmem>>, vector<1x4xf32>
    %79 = vector.shape_cast %78 : vector<1x4xf32> to vector<4xf32>
    %80 = vector.shape_cast %79 : vector<4xf32> to vector<1x1x4xf32>
    %81 = vector.broadcast %80 : vector<1x1x4xf32> to vector<8x8x4xf32>
    %82 = arith.addf %77, %81 : vector<8x8x4xf32>
    %cst_22 = arith.constant 0.000000e+00 : f32
    %83 = vector.broadcast %cst_22 : f32 to vector<8x8x4xf32>
    %84 = arith.maximumf %82, %83 : vector<8x8x4xf32>
    %85 = vector.shape_cast %84 : vector<8x8x4xf32> to vector<64x4xf32>
    %c0_23 = arith.constant 0 : index
    %c0_24 = arith.constant 0 : index
    %86 = vector.load %arg8[%c0_23, %c0_24] : memref<4x8xf32, #tpu.memory_space<vmem>>, vector<4x8xf32>
    %cst_25 = arith.constant dense<0.000000e+00> : vector<64x8xf32>
    %87 = tpu.matmul %85, %86, %cst_25 {dimension_numbers = #tpu.dot_dimension_numbers<[1], [0], [0], [1], [0, 0, 1, 1], [], []>, precision = #tpu.contract_precision<fp32>} : vector<64x4xf32>, vector<4x8xf32>, vector<64x8xf32> -> vector<64x8xf32>
    %c0_26 = arith.constant 0 : index
    %c0_27 = arith.constant 0 : index
    %88 = vector.load %arg9[%c0_26, %c0_27] : memref<1x8xf32, #tpu.memory_space<vmem>>, vector<1x8xf32>
    %89 = vector.shape_cast %88 : vector<1x8xf32> to vector<8xf32>
    %90 = vector.shape_cast %89 : vector<8xf32> to vector<1x8xf32>
    %91 = vector.broadcast %90 : vector<1x8xf32> to vector<64x8xf32>
    %92 = arith.mulf %87, %91 : vector<64x8xf32>
    %c0_28 = arith.constant 0 : index
    %c0_29 = arith.constant 0 : index
    %93 = vector.load %arg10[%c0_28, %c0_29] : memref<1x8xf32, #tpu.memory_space<vmem>>, vector<1x8xf32>
    %94 = vector.shape_cast %93 : vector<1x8xf32> to vector<8xf32>
    %95 = vector.shape_cast %94 : vector<8xf32> to vector<1x8xf32>
    %96 = vector.broadcast %95 : vector<1x8xf32> to vector<64x8xf32>
    %97 = arith.addf %92, %96 : vector<64x8xf32>
    %cst_30 = arith.constant 0.000000e+00 : f32
    %98 = vector.broadcast %cst_30 : f32 to vector<64x8xf32>
    %99 = arith.maximumf %97, %98 : vector<64x8xf32>
    %100 = vector.shape_cast %99 : vector<64x8xf32> to vector<8x8x8xf32>
    %c0_31 = arith.constant 0 : index
    %c0_32 = arith.constant 0 : index
    %c0_33 = arith.constant 0 : index
    %c0_34 = arith.constant 0 : index
    %101 = vector.load %arg11[%c0_31, %c0_32, %c0_33, %c0_34] : memref<1x8x8x8xf32, #tpu.memory_space<vmem>>, vector<1x8x8x8xf32>
    %102 = vector.shape_cast %101 : vector<1x8x8x8xf32> to vector<8x8x8xf32>
    %103 = vector.shape_cast %100 : vector<8x8x8xf32> to vector<1x8x8x8xf32>
    tpu.vector_store %arg11[%c0_31, %c0_32, %c0_33, %c0_34], %103 {strides = array<i32>} : memref<1x8x8x8xf32, #tpu.memory_space<vmem>>, vector<1x8x8x8xf32>,
    return
  }
  func.func @transform_0(%arg0: i32) -> (i32, i32, i32, i32) {
    %c0_i32 = arith.constant 0 : i32
    %c0_i32_0 = arith.constant 0 : i32
    %c0_i32_1 = arith.constant 0 : i32
    %c0_i32_2 = arith.constant 0 : i32
    return %arg0, %c0_i32, %c0_i32_0, %c0_i32_1 : i32, i32, i32, i32
  }
  func.func @transform_1(%arg0: i32) -> (i32, i32, i32, i32) {
    %c0_i32 = arith.constant 0 : i32
    %c0_i32_0 = arith.constant 0 : i32
    %c0_i32_1 = arith.constant 0 : i32
    %c0_i32_2 = arith.constant 0 : i32
    return %arg0, %c0_i32, %c0_i32_0, %c0_i32_1 : i32, i32, i32, i32
  }
  func.func @transform_2(%arg0: i32) -> (i32, i32, i32, i32) {
    %c0_i32 = arith.constant 0 : i32
    %c0_i32_0 = arith.constant 0 : i32
    %c0_i32_1 = arith.constant 0 : i32
    %c0_i32_2 = arith.constant 0 : i32
    return %arg0, %c0_i32, %c0_i32_0, %c0_i32_1 : i32, i32, i32, i32
  }
  func.func @transform_3(%arg0: i32) -> (i32, i32, i32, i32) {
    %c0_i32 = arith.constant 0 : i32
    %c0_i32_0 = arith.constant 0 : i32
    %c0_i32_1 = arith.constant 0 : i32
    %c0_i32_2 = arith.constant 0 : i32
    return %arg0, %c0_i32, %c0_i32_0, %c0_i32_1 : i32, i32, i32, i32
  }
  func.func @transform_4(%arg0: i32) -> (i32, i32, i32) {
    %c0_i32 = arith.constant 0 : i32
    %c0_i32_0 = arith.constant 0 : i32
    %c0_i32_1 = arith.constant 0 : i32
    %c0_i32_2 = arith.constant 0 : i32
    return %c0_i32, %c0_i32_0, %c0_i32_1 : i32, i32, i32
  }
  func.func @transform_5(%arg0: i32) -> (i32, i32) {
    %c0_i32 = arith.constant 0 : i32
    %c0_i32_0 = arith.constant 0 : i32
    %c0_i32_1 = arith.constant 0 : i32
    return %c0_i32, %c0_i32_0 : i32, i32
  }
  func.func @transform_6(%arg0: i32) -> (i32, i32) {
    %c0_i32 = arith.constant 0 : i32
    %c0_i32_0 = arith.constant 0 : i32
    %c0_i32_1 = arith.constant 0 : i32
    return %c0_i32, %c0_i32_0 : i32, i32
  }
  func.func @transform_7(%arg0: i32) -> (i32, i32) {
    %c0_i32 = arith.constant 0 : i32
    %c0_i32_0 = arith.constant 0 : i32
    %c0_i32_1 = arith.constant 0 : i32
    return %c0_i32, %c0_i32_0 : i32, i32
  }
  func.func @transform_8(%arg0: i32) -> (i32, i32) {
    %c0_i32 = arith.constant 0 : i32
    %c0_i32_0 = arith.constant 0 : i32
    %c0_i32_1 = arith.constant 0 : i32
    return %c0_i32, %c0_i32_0 : i32, i32
  }
  func.func @transform_9(%arg0: i32) -> (i32, i32) {
    %c0_i32 = arith.constant 0 : i32
    %c0_i32_0 = arith.constant 0 : i32
    %c0_i32_1 = arith.constant 0 : i32
    return %c0_i32, %c0_i32_0 : i32, i32
  }
  func.func @transform_10(%arg0: i32) -> (i32, i32, i32, i32) {
    %c0_i32 = arith.constant 0 : i32
    %c0_i32_0 = arith.constant 0 : i32
    %c0_i32_1 = arith.constant 0 : i32
    %c0_i32_2 = arith.constant 0 : i32
    return %arg0, %c0_i32, %c0_i32_0, %c0_i32_1 : i32, i32, i32, i32
  }
}

</mosaic_0001>

<llo_original>
// kernel: tpu_custom_call.1
$region0: #{tpu_custom_call.1}
  #allocation0 [shape = 'u32[]', space=smem, size = 0x4, offset = 0x4, fixed_abs, tag = 'smem constant byte address 0x4 - core index']
  #allocation1 [shape = 'u32[144,128]{1,0:T(1,128)}', space=vmem, size = 0x12000, scoped, tag = 'internal scratch']
  %s0 = inlined_call_operand.vmem [shape: f32[2,9,9,4], index: 0, kind: input, shape index: {}]
  %s1 = inlined_call_operand.vmem [shape: f32[2,9,9,4], index: 1, kind: input, shape index: {}]
  %s2 = inlined_call_operand.vmem [shape: f32[2,9,9,4], index: 2, kind: input, shape index: {}]
  %s3 = inlined_call_operand.vmem [shape: f32[2,9,9,4], index: 3, kind: input, shape index: {}]
  %s4 = inlined_call_operand.vmem [shape: f32[3,3,4], index: 4, kind: input, shape index: {}]
  %s5 = inlined_call_operand.vmem [shape: f32[1,4], index: 5, kind: input, shape index: {}]
  %s6 = inlined_call_operand.vmem [shape: f32[1,4], index: 6, kind: input, shape index: {}]
  %s7 = inlined_call_operand.vmem [shape: f32[4,8], index: 7, kind: input, shape index: {}]
  %s8 = inlined_call_operand.vmem [shape: f32[1,8], index: 8, kind: input, shape index: {}]
  %s9 = inlined_call_operand.vmem [shape: f32[1,8], index: 9, kind: input, shape index: {}]
  %s10 = inlined_call_operand.hbm [shape: f32[2,8,8,8], index: 10, kind: output, shape index: {}]
  %s11 = sld [smem:[#allocation0]]
  $region73: #{tpu_custom_call.1} parent=0
    _
  %s13 = ssub.s32 1, %s11
  %s14 = scalar_select 0, %s13, %s11
  $region1: #{tpu_custom_call.1} parent=0
    #allocation2 [shape = 'u8[65536]{0}', space=vmem, size = 0x10000, scoped, tag = 'output window, operand 0']
    #allocation3 [shape = 's32[2]{0}', space=sflag, size = 0x8, scoped, tag = 'scoped memory for tpu_custom_call.1']
    %15 = vsyncpa [#allocation3], 0
    %s16 = scalar_lea.sflag [#allocation3], 1
    %17 = vsyncpa %s16, 0
    loop: start=0, step=1, limit=4
    $region2: #{tpu_custom_call.1} parent=1 // loop_pre_header
      _
    $region3: #{tpu_custom_call.1} parent=1 // loop_header
      %s19 = sphi 0, %s23
      %p20 = scmp.ge.s32.totalorder %s19, 4
      %s29 = sphi 0, %s31
      %s32 = sphi 0, %s29
      %s33 = sphi 0, %s32
      %s49 = sphi 0, %s33
      %s55 = sphi 0, %s57
      %s58 = sphi 0, %s55
      %s59 = sphi 0, %s58
      %s75 = sphi 0, %s59
      %s81 = sphi 0, %s83
      %s84 = sphi 0, %s81
      %s85 = sphi 0, %s84
      %s101 = sphi 0, %s85
      %s107 = sphi 0, %s109
      %s110 = sphi 0, %s107
      %s111 = sphi 0, %s110
      %s127 = sphi 0, %s111
      %s131 = sphi 0, %s131
      %s133 = sphi 0, %s131
      %s134 = sphi 0, %s133
      %s148 = sphi 0, %s134
      %s152 = sphi 0, %s152
      %s154 = sphi 0, %s152
      %s155 = sphi 0, %s154
      %s169 = sphi 0, %s155
      %s173 = sphi 0, %s173
      %s175 = sphi 0, %s173
      %s176 = sphi 0, %s175
      %s190 = sphi 0, %s176
      %s194 = sphi 0, %s194
      %s196 = sphi 0, %s194
      %s197 = sphi 0, %s196
      %s211 = sphi 0, %s197
      %s215 = sphi 0, %s215
      %s217 = sphi 0, %s215
      %s218 = sphi 0, %s217
      %s232 = sphi 0, %s218
      %s236 = sphi 0, %s236
      %s238 = sphi 0, %s236
      %s239 = sphi 0, %s238
      %s253 = sphi 0, %s239
      %s259 = sphi 0, %s261
      %s262 = sphi 0, %s259
      %s263 = sphi 0, %s262
      %s279 = sphi 0, %s263
    $region4: #{tpu_custom_call.1} parent=1 // loop_header_branch
      %22 = sbr.rel (%p20) target = $region8
    $region5: #{tpu_custom_call.1} parent=1 // loop_body
      %s24 = ssub.s32 %s19, 1
      %s25 = ssub.s32 %s19, 2
      %s26 = sadd.s32 %s19, 1
      %s27 = ssub.s32 %s19, %s26
      %p28 = scmp.eq.s32.totalorder %s27, 0
      %s30 = sadd.s32 %s29, 1
      %s31 = scalar_select %p28, %s29, %s30
      %p34 = pneg %p28
      %p35 = scmp.eq.s32.totalorder %s19, 1
      %p36 = por %p34, %p35
      %p37 = scmp.ne.s32.totalorder %s29, %s32
      %p38 = scmp.eq.s32.totalorder %s19, 0
      %p39 = por %p37, %p38
      %p40 = scmp.ne.s32.totalorder %s29, %s32
      %p41 = scmp.eq.s32.totalorder %s24, 1
      %p42 = por %p40, %p41
      %p43 = scmp.ne.s32.totalorder %s32, %s33
      %p44 = scmp.eq.s32.totalorder %s24, 0
      %p45 = por %p43, %p44
      %p46 = scmp.ne.s32.totalorder %s32, %s33
      %p47 = scmp.eq.s32.totalorder %s25, 1
      %p48 = por %p46, %p47
      %p50 = scmp.ne.s32.totalorder %s33, %s49
      %p51 = scmp.eq.s32.totalorder %s25, 0
      %p52 = por %p50, %p51
      %s53 = ssub.s32 %s19, %s26
      %p54 = scmp.eq.s32.totalorder %s53, 0
      %s56 = sadd.s32 %s55, 1
      %s57 = scalar_select %p54, %s55, %s56
      %p60 = pneg %p54
      %p61 = scmp.eq.s32.totalorder %s19, 1
      %p62 = por %p60, %p61
      %p63 = scmp.ne.s32.totalorder %s55, %s58
      %p64 = scmp.eq.s32.totalorder %s19, 0
      %p65 = por %p63, %p64
      %p66 = scmp.ne.s32.totalorder %s55, %s58
      %p67 = scmp.eq.s32.totalorder %s24, 1
      %p68 = por %p66, %p67
      %p69 = scmp.ne.s32.totalorder %s58, %s59
      %p70 = scmp.eq.s32.totalorder %s24, 0
      %p71 = por %p69, %p70
      %p72 = scmp.ne.s32.totalorder %s58, %s59
      %p73 = scmp.eq.s32.totalorder %s25, 1
      %p74 = por %p72, %p73
      %p76 = scmp.ne.s32.totalorder %s59, %s75
      %p77 = scmp.eq.s32.totalorder %s25, 0
      %p78 = por %p76, %p77
      %s79 = ssub.s32 %s19, %s26
      %p80 = scmp.eq.s32.totalorder %s79, 0
      %s82 = sadd.s32 %s81, 1
      %s83 = scalar_select %p80, %s81, %s82
      %p86 = pneg %p80
      %p87 = scmp.eq.s32.totalorder %s19, 1
      %p88 = por %p86, %p87
      %p89 = scmp.ne.s32.totalorder %s81, %s84
      %p90 = scmp.eq.s32.totalorder %s19, 0
      %p91 = por %p89, %p90
      %p92 = scmp.ne.s32.totalorder %s81, %s84
      %p93 = scmp.eq.s32.totalorder %s24, 1
      %p94 = por %p92, %p93
      %p95 = scmp.ne.s32.totalorder %s84, %s85
      %p96 = scmp.eq.s32.totalorder %s24, 0
      %p97 = por %p95, %p96
      %p98 = scmp.ne.s32.totalorder %s84, %s85
      %p99 = scmp.eq.s32.totalorder %s25, 1
      %p100 = por %p98, %p99
      %p102 = scmp.ne.s32.totalorder %s85, %s101
      %p103 = scmp.eq.s32.totalorder %s25, 0
      %p104 = por %p102, %p103
      %s105 = ssub.s32 %s19, %s26
      %p106 = scmp.eq.s32.totalorder %s105, 0
      %s108 = sadd.s32 %s107, 1
      %s109 = scalar_select %p106, %s107, %s108
      %p112 = pneg %p106
      %p113 = scmp.eq.s32.totalorder %s19, 1
      %p114 = por %p112, %p113
      %p115 = scmp.ne.s32.totalorder %s107, %s110
      %p116 = scmp.eq.s32.totalorder %s19, 0
      %p117 = por %p115, %p116
      %p118 = scmp.ne.s32.totalorder %s107, %s110
      %p119 = scmp.eq.s32.totalorder %s24, 1
      %p120 = por %p118, %p119
      %p121 = scmp.ne.s32.totalorder %s110, %s111
      %p122 = scmp.eq.s32.totalorder %s24, 0
      %p123 = por %p121, %p122
      %p124 = scmp.ne.s32.totalorder %s110, %s111
      %p125 = scmp.eq.s32.totalorder %s25, 1
      %p126 = por %p124, %p125
      %p128 = scmp.ne.s32.totalorder %s111, %s127
      %p129 = scmp.eq.s32.totalorder %s25, 0
      %p130 = por %p128, %p129
      %s132 = sadd.s32 %s131, 1
      %p135 = scmp.eq.s32.totalorder %s19, 1
      %p136 = scmp.ne.s32.totalorder %s131, %s133
      %p137 = scmp.eq.s32.totalorder %s19, 0
      %p138 = por %p136, %p137
      %p139 = scmp.ne.s32.totalorder %s131, %s133
      %p140 = scmp.eq.s32.totalorder %s24, 1
      %p141 = por %p139, %p140
      %p142 = scmp.ne.s32.totalorder %s133, %s134
      %p143 = scmp.eq.s32.totalorder %s24, 0
      %p144 = por %p142, %p143
      %p145 = scmp.ne.s32.totalorder %s133, %s134
      %p146 = scmp.eq.s32.totalorder %s25, 1
      %p147 = por %p145, %p146
      %p149 = scmp.ne.s32.totalorder %s134, %s148
      %p150 = scmp.eq.s32.totalorder %s25, 0
      %p151 = por %p149, %p150
      %s153 = sadd.s32 %s152, 1
      %p156 = scmp.eq.s32.totalorder %s19, 1
      %p157 = scmp.ne.s32.totalorder %s152, %s154
      %p158 = scmp.eq.s32.totalorder %s19, 0
      %p159 = por %p157, %p158
      %p160 = scmp.ne.s32.totalorder %s152, %s154
      %p161 = scmp.eq.s32.totalorder %s24, 1
      %p162 = por %p160, %p161
      %p163 = scmp.ne.s32.totalorder %s154, %s155
      %p164 = scmp.eq.s32.totalorder %s24, 0
      %p165 = por %p163, %p164
      %p166 = scmp.ne.s32.totalorder %s154, %s155
      %p167 = scmp.eq.s32.totalorder %s25, 1
      %p168 = por %p166, %p167
      %p170 = scmp.ne.s32.totalorder %s155, %s169
      %p171 = scmp.eq.s32.totalorder %s25, 0
      %p172 = por %p170, %p171
      %s174 = sadd.s32 %s173, 1
      %p177 = scmp.eq.s32.totalorder %s19, 1
      %p178 = scmp.ne.s32.totalorder %s173, %s175
      %p179 = scmp.eq.s32.totalorder %s19, 0
      %p180 = por %p178, %p179
      %p181 = scmp.ne.s32.totalorder %s173, %s175
      %p182 = scmp.eq.s32.totalorder %s24, 1
      %p183 = por %p181, %p182
      %p184 = scmp.ne.s32.totalorder %s175, %s176
      %p185 = scmp.eq.s32.totalorder %s24, 0
      %p186 = por %p184, %p185
      %p187 = scmp.ne.s32.totalorder %s175, %s176
      %p188 = scmp.eq.s32.totalorder %s25, 1
      %p189 = por %p187, %p188
      %p191 = scmp.ne.s32.totalorder %s176, %s190
      %p192 = scmp.eq.s32.totalorder %s25, 0
      %p193 = por %p191, %p192
      %s195 = sadd.s32 %s194, 1
      %p198 = scmp.eq.s32.totalorder %s19, 1
      %p199 = scmp.ne.s32.totalorder %s194, %s196
      %p200 = scmp.eq.s32.totalorder %s19, 0
      %p201 = por %p199, %p200
      %p202 = scmp.ne.s32.totalorder %s194, %s196
      %p203 = scmp.eq.s32.totalorder %s24, 1
      %p204 = por %p202, %p203
      %p205 = scmp.ne.s32.totalorder %s196, %s197
      %p206 = scmp.eq.s32.totalorder %s24, 0
      %p207 = por %p205, %p206
      %p208 = scmp.ne.s32.totalorder %s196, %s197
      %p209 = scmp.eq.s32.totalorder %s25, 1
      %p210 = por %p208, %p209
      %p212 = scmp.ne.s32.totalorder %s197, %s211
      %p213 = scmp.eq.s32.totalorder %s25, 0
      %p214 = por %p212, %p213
      %s216 = sadd.s32 %s215, 1
      %p219 = scmp.eq.s32.totalorder %s19, 1
      %p220 = scmp.ne.s32.totalorder %s215, %s217
      %p221 = scmp.eq.s32.totalorder %s19, 0
      %p222 = por %p220, %p221
      %p223 = scmp.ne.s32.totalorder %s215, %s217
      %p224 = scmp.eq.s32.totalorder %s24, 1
      %p225 = por %p223, %p224
      %p226 = scmp.ne.s32.totalorder %s217, %s218
      %p227 = scmp.eq.s32.totalorder %s24, 0
      %p228 = por %p226, %p227
      %p229 = scmp.ne.s32.totalorder %s217, %s218
      %p230 = scmp.eq.s32.totalorder %s25, 1
      %p231 = por %p229, %p230
      %p233 = scmp.ne.s32.totalorder %s218, %s232
      %p234 = scmp.eq.s32.totalorder %s25, 0
      %p235 = por %p233, %p234
      %s237 = sadd.s32 %s236, 1
      %p240 = scmp.eq.s32.totalorder %s19, 1
      %p241 = scmp.ne.s32.totalorder %s236, %s238
      %p242 = scmp.eq.s32.totalorder %s19, 0
      %p243 = por %p241, %p242
      %p244 = scmp.ne.s32.totalorder %s236, %s238
      %p245 = scmp.eq.s32.totalorder %s24, 1
      %p246 = por %p244, %p245
      %p247 = scmp.ne.s32.totalorder %s238, %s239
      %p248 = scmp.eq.s32.totalorder %s24, 0
      %p249 = por %p247, %p248
      %p250 = scmp.ne.s32.totalorder %s238, %s239
      %p251 = scmp.eq.s32.totalorder %s25, 1
      %p252 = por %p250, %p251
      %p254 = scmp.ne.s32.totalorder %s239, %s253
      %p255 = scmp.eq.s32.totalorder %s25, 0
      %p256 = por %p254, %p255
      %s257 = ssub.s32 %s19, %s26
      %p258 = scmp.eq.s32.totalorder %s257, 0
      %s260 = sadd.s32 %s259, 1
      %s261 = scalar_select %p258, %s259, %s260
      %p264 = pneg %p258
      %p265 = scmp.eq.s32.totalorder %s19, 1
      %p266 = por %p264, %p265
      %p267 = scmp.ne.s32.totalorder %s259, %s262
      %p268 = scmp.eq.s32.totalorder %s19, 0
      %p269 = por %p267, %p268
      %p270 = scmp.ne.s32.totalorder %s259, %s262
      %p271 = scmp.eq.s32.totalorder %s24, 1
      %p272 = por %p270, %p271
      %p273 = scmp.ne.s32.totalorder %s262, %s263
      %p274 = scmp.eq.s32.totalorder %s24, 0
      %p275 = por %p273, %p274
      %p276 = scmp.ne.s32.totalorder %s262, %s263
      %p277 = scmp.eq.s32.totalorder %s25, 1
      %p278 = por %p276, %p277
      %p280 = scmp.ne.s32.totalorder %s263, %s279
      %p281 = scmp.eq.s32.totalorder %s25, 0
      %p282 = por %p280, %p281
      %p283 = scmp.le.s32.totalorder 1, %s19
      %p284 = scmp.lt.s32.totalorder %s19, 3
      %p285 = pnand %p283, %p284
      %p286 = pneg %p285
      // Predicated region
      $region9: #{tpu_custom_call.1} parent=5 // pred_check
        _
      $region10: #{tpu_custom_call.1} parent=5 // pred_check_branch
        %288 = sbr.rel (%p285) target = $region12
      $region11: #{tpu_custom_call.1} parent=5 // pred_region
        %s289 = ssub.s32 %s19, 1
        // Predicated region
        $region13: #{tpu_custom_call.1} parent=11 // pred_check
          %p290 = pneg %p144
        $region14: #{tpu_custom_call.1} parent=11 // pred_check_branch
          %292 = sbr.rel (%p290) target = $region16
        $region15: #{tpu_custom_call.1} parent=11 // pred_region
          _
        $region16: #{tpu_custom_call.1} parent=11 // pred_fallthru
          _
        // Predicated region
        $region17: #{tpu_custom_call.1} parent=11 // pred_check
          %p293 = pneg %p165
        $region18: #{tpu_custom_call.1} parent=11 // pred_check_branch
          %295 = sbr.rel (%p293) target = $region20
        $region19: #{tpu_custom_call.1} parent=11 // pred_region
          _
        $region20: #{tpu_custom_call.1} parent=11 // pred_fallthru
          _
        // Predicated region
        $region21: #{tpu_custom_call.1} parent=11 // pred_check
          %p296 = pneg %p186
        $region22: #{tpu_custom_call.1} parent=11 // pred_check_branch
          %298 = sbr.rel (%p296) target = $region24
        $region23: #{tpu_custom_call.1} parent=11 // pred_region
          _
        $region24: #{tpu_custom_call.1} parent=11 // pred_fallthru
          _
        // Predicated region
        $region25: #{tpu_custom_call.1} parent=11 // pred_check
          %p299 = pneg %p207
        $region26: #{tpu_custom_call.1} parent=11 // pred_check_branch
          %301 = sbr.rel (%p299) target = $region28
        $region27: #{tpu_custom_call.1} parent=11 // pred_region
          _
        $region28: #{tpu_custom_call.1} parent=11 // pred_fallthru
          _
        // Predicated region
        $region29: #{tpu_custom_call.1} parent=11 // pred_check
          %p302 = pneg %p228
        $region30: #{tpu_custom_call.1} parent=11 // pred_check_branch
          %304 = sbr.rel (%p302) target = $region32
        $region31: #{tpu_custom_call.1} parent=11 // pred_region
          _
        $region32: #{tpu_custom_call.1} parent=11 // pred_fallthru
          _
        // Predicated region
        $region33: #{tpu_custom_call.1} parent=11 // pred_check
          %p305 = pneg %p249
        $region34: #{tpu_custom_call.1} parent=11 // pred_check_branch
          %307 = sbr.rel (%p305) target = $region36
        $region35: #{tpu_custom_call.1} parent=11 // pred_region
          _
        $region36: #{tpu_custom_call.1} parent=11 // pred_fallthru
          _
      $region12: #{tpu_custom_call.1} parent=5 // pred_fallthru
        _
      %p308 = scmp.lt.s32.totalorder %s19, 2
      // Predicated region
      $region37: #{tpu_custom_call.1} parent=5 // pred_check
        %p309 = pneg %p308
      $region38: #{tpu_custom_call.1} parent=5 // pred_check_branch
        %311 = sbr.rel (%p309) target = $region40
      $region39: #{tpu_custom_call.1} parent=5 // pred_region
        // Predicated region
        $region41: #{tpu_custom_call.1} parent=39 // pred_check
          %p312 = pneg %p39
        $region42: #{tpu_custom_call.1} parent=39 // pred_check_branch
          %314 = sbr.rel (%p312) target = $region44
        $region43: #{tpu_custom_call.1} parent=39 // pred_region
          %p315 = scmp.lt.s32.totalorder %s19, 1
          %s316 = scalar_select %p315, %s19, 1
          %s317 = smul.addr %s316, 18
          %s318 = smul.addr %s317, 8
          %s319 = scalar_lea.vmem %s0, %s318
        $region44: #{tpu_custom_call.1} parent=39 // pred_fallthru
          _
        // Predicated region
        $region45: #{tpu_custom_call.1} parent=39 // pred_check
          %p320 = pneg %p65
        $region46: #{tpu_custom_call.1} parent=39 // pred_check_branch
          %322 = sbr.rel (%p320) target = $region48
        $region47: #{tpu_custom_call.1} parent=39 // pred_region
          %p323 = scmp.lt.s32.totalorder %s19, 1
          %s324 = scalar_select %p323, %s19, 1
          %s325 = smul.addr %s324, 18
          %s326 = smul.addr %s325, 8
          %s327 = scalar_lea.vmem %s1, %s326
        $region48: #{tpu_custom_call.1} parent=39 // pred_fallthru
          _
        // Predicated region
        $region49: #{tpu_custom_call.1} parent=39 // pred_check
          %p328 = pneg %p91
        $region50: #{tpu_custom_call.1} parent=39 // pred_check_branch
          %330 = sbr.rel (%p328) target = $region52
        $region51: #{tpu_custom_call.1} parent=39 // pred_region
          %p331 = scmp.lt.s32.totalorder %s19, 1
          %s332 = scalar_select %p331, %s19, 1
          %s333 = smul.addr %s332, 18
          %s334 = smul.addr %s333, 8
          %s335 = scalar_lea.vmem %s2, %s334
        $region52: #{tpu_custom_call.1} parent=39 // pred_fallthru
          _
        // Predicated region
        $region53: #{tpu_custom_call.1} parent=39 // pred_check
          %p336 = pneg %p117
        $region54: #{tpu_custom_call.1} parent=39 // pred_check_branch
          %338 = sbr.rel (%p336) target = $region56
        $region55: #{tpu_custom_call.1} parent=39 // pred_region
          %p339 = scmp.lt.s32.totalorder %s19, 1
          %s340 = scalar_select %p339, %s19, 1
          %s341 = smul.addr %s340, 18
          %s342 = smul.addr %s341, 8
          %s343 = scalar_lea.vmem %s3, %s342
        $region56: #{tpu_custom_call.1} parent=39 // pred_fallthru
          _
      $region40: #{tpu_custom_call.1} parent=5 // pred_fallthru
        _
      %p344 = scmp.le.s32.totalorder 1, %s19
      %p345 = scmp.lt.s32.totalorder %s19, 3
      %p346 = pnand %p344, %p345
      %p347 = pneg %p346
      // Predicated region
      $region57: #{tpu_custom_call.1} parent=5 // pred_check
        _
      $region58: #{tpu_custom_call.1} parent=5 // pred_check_branch
        %349 = sbr.rel (%p346) target = $region60
      $region59: #{tpu_custom_call.1} parent=5 // pred_region
        %s350 = ssub.s32 %s19, 1
        %p351 = scmp.lt.s32.totalorder %s24, 1
        %s352 = scalar_select %p351, %s24, 1
        %s353 = smul.addr %s352, 18
        %s354 = smul.addr %s353, 8
        %s355 = scalar_lea.vmem %s0, %s354
        %p356 = pneg %p45
        %p357 = pneg %p42
        %p358 = scmp.lt.s32.totalorder %s24, 1
        %s359 = scalar_select %p358, %s24, 1
        %s360 = smul.addr %s359, 18
        %s361 = smul.addr %s360, 8
        %s362 = scalar_lea.vmem %s1, %s361
        %p363 = pneg %p71
        %p364 = pneg %p68
        %p365 = scmp.lt.s32.totalorder %s24, 1
        %s366 = scalar_select %p365, %s24, 1
        %s367 = smul.addr %s366, 18
        %s368 = smul.addr %s367, 8
        %s369 = scalar_lea.vmem %s2, %s368
        %p370 = pneg %p97
        %p371 = pneg %p94
        %p372 = scmp.lt.s32.totalorder %s24, 1
        %s373 = scalar_select %p372, %s24, 1
        %s374 = smul.addr %s373, 18
        %s375 = smul.addr %s374, 8
        %s376 = scalar_lea.vmem %s3, %s375
        %p377 = pneg %p123
        %p378 = pneg %p120
        %p379 = pneg %p144
        %p380 = pneg %p141
        %p381 = pneg %p165
        %p382 = pneg %p162
        %p383 = pneg %p186
        %p384 = pneg %p183
        %p385 = pneg %p207
        %p386 = pneg %p204
        %p387 = pneg %p228
        %p388 = pneg %p225
        %p389 = pneg %p249
        %p390 = pneg %p246
        %p391 = pneg %p275
        %p392 = pneg %p272
        %s393 = sand.u32 %s262, 1
        %s394 = scalar_lea.sflag [#allocation3], %s393
        %s395 = sand.u32 %s262, 1
        %s396 = smul.addr %s395, 64
        %s397 = scalar_lea.vmem [#allocation2], %s396
        %p398 = scmp.lt.s32.totalorder %s24, 1
        %s399 = scalar_select %p398, %s24, 1
        %s400 = smul.addr %s399, 18
        %s401 = smul.addr %s400, 8
        %s402 = scalar_lea.vmem %s0, %s401
        %p403 = scmp.lt.s32.totalorder %s24, 1
        %s404 = scalar_select %p403, %s24, 1
        %s405 = smul.addr %s404, 18
        %s406 = smul.addr %s405, 8
        %s407 = scalar_lea.vmem %s1, %s406
        %p408 = scmp.lt.s32.totalorder %s24, 1
        %s409 = scalar_select %p408, %s24, 1
        %s410 = smul.addr %s409, 18
        %s411 = smul.addr %s410, 8
        %s412 = scalar_lea.vmem %s2, %s411
        %p413 = scmp.lt.s32.totalorder %s24, 1
        %s414 = scalar_select %p413, %s24, 1
        %s415 = smul.addr %s414, 18
        %s416 = smul.addr %s415, 8
        %s417 = scalar_lea.vmem %s3, %s416
        %v418 = vld [vmem:[%s402] sm:$0xff]
        %v419 = vld [vmem:[%s402 + $0x8] sm:$0x1]
        %v420 = vld [vmem:[%s402 + $0x10] sm:$0xff]
        %v421 = vld [vmem:[%s402 + $0x18] sm:$0x1]
        %v422 = vld [vmem:[%s402 + $0x20] sm:$0xff]
        %v423 = vld [vmem:[%s402 + $0x28] sm:$0x1]
        %v424 = vld [vmem:[%s402 + $0x30] sm:$0xff]
        %v425 = vld [vmem:[%s402 + $0x38] sm:$0x1]
        %v426 = vld [vmem:[%s402 + $0x40] sm:$0xff]
        %v427 = vld [vmem:[%s402 + $0x48] sm:$0x1]
        %v428 = vld [vmem:[%s402 + $0x50] sm:$0xff]
        %v429 = vld [vmem:[%s402 + $0x58] sm:$0x1]
        %v430 = vld [vmem:[%s402 + $0x60] sm:$0xff]
        %v431 = vld [vmem:[%s402 + $0x68] sm:$0x1]
        %v432 = vld [vmem:[%s402 + $0x70] sm:$0xff]
        %v433 = vld [vmem:[%s402 + $0x78] sm:$0x1]
        %v434 = vld [vmem:[%s402 + $0x80] sm:$0xff]
        %v435 = vld [vmem:[%s402 + $0x88] sm:$0x1]
        %v436 = vld [vmem:[%s407] sm:$0xff]
        %v437 = vld [vmem:[%s407 + $0x10] sm:$0xff]
        %v438 = vld [vmem:[%s407 + $0x20] sm:$0xff]
        %v439 = vld [vmem:[%s407 + $0x30] sm:$0xff]
        %v440 = vld [vmem:[%s407 + $0x40] sm:$0xff]
        %v441 = vld [vmem:[%s407 + $0x50] sm:$0xff]
        %v442 = vld [vmem:[%s407 + $0x60] sm:$0xff]
        %v443 = vld [vmem:[%s407 + $0x70] sm:$0xff]
        %v444 = vld [vmem:[%s407 + $0x80] sm:$0xff]
        %v445 = vld [vmem:[%s412] sm:$0xff]
        %v446 = vld [vmem:[%s412 + $0x8] sm:$0x1]
        %v447 = vld [vmem:[%s412 + $0x10] sm:$0xff]
        %v448 = vld [vmem:[%s412 + $0x18] sm:$0x1]
        %v449 = vld [vmem:[%s412 + $0x20] sm:$0xff]
        %v450 = vld [vmem:[%s412 + $0x28] sm:$0x1]
        %v451 = vld [vmem:[%s412 + $0x30] sm:$0xff]
        %v452 = vld [vmem:[%s412 + $0x38] sm:$0x1]
        %v453 = vld [vmem:[%s412 + $0x40] sm:$0xff]
        %v454 = vld [vmem:[%s412 + $0x48] sm:$0x1]
        %v455 = vld [vmem:[%s412 + $0x50] sm:$0xff]
        %v456 = vld [vmem:[%s412 + $0x58] sm:$0x1]
        %v457 = vld [vmem:[%s412 + $0x60] sm:$0xff]
        %v458 = vld [vmem:[%s412 + $0x68] sm:$0x1]
        %v459 = vld [vmem:[%s412 + $0x70] sm:$0xff]
        %v460 = vld [vmem:[%s412 + $0x78] sm:$0x1]
        %v461 = vld [vmem:[%s417] sm:$0xff]
        %v462 = vld [vmem:[%s417 + $0x10] sm:$0xff]
        %v463 = vld [vmem:[%s417 + $0x20] sm:$0xff]
        %v464 = vld [vmem:[%s417 + $0x30] sm:$0xff]
        %v465 = vld [vmem:[%s417 + $0x40] sm:$0xff]
        %v466 = vld [vmem:[%s417 + $0x50] sm:$0xff]
        %v467 = vld [vmem:[%s417 + $0x60] sm:$0xff]
        %v468 = vld [vmem:[%s417 + $0x70] sm:$0xff]
        %v469 = vld [vmem:[%s4] sm:$0x7]
        %v470 = vld [vmem:[%s4 + $0x4] sm:$0x7]
        %v471 = vld [vmem:[%s4 + $0x8] sm:$0x7]
        %v472 = vlaneseq
        %v473 = vshrl.u32 %v472, 7
        %v474 = vsub.s32 0, %v473
        %v475 = vrot.slane %v469, %v474
        %v476 = vmul.f32 %v418, %v475
        %v477 = vmul.f32 %v420, %v475
        %v478 = vmul.f32 %v422, %v475
        %v479 = vmul.f32 %v424, %v475
        %v480 = vmul.f32 %v426, %v475
        %v481 = vmul.f32 %v428, %v475
        %v482 = vmul.f32 %v430, %v475
        %v483 = vmul.f32 %v432, %v475
        %v484 = vadd.f32 %v476, 0.0
        %v485 = vadd.f32 %v477, 0.0
        %v486 = vadd.f32 %v478, 0.0
        %v487 = vadd.f32 %v479, 0.0
        %v488 = vadd.f32 %v480, 0.0
        %v489 = vadd.f32 %v481, 0.0
        %v490 = vadd.f32 %v482, 0.0
        %v491 = vadd.f32 %v483, 0.0
        %v492 = vlaneseq
        %v493 = vshrl.u32 %v492, 7
        %v494 = vsub.s32 1, %v493
        %v495 = vrot.slane %v469, %v494
        %v496 = vmul.f32 %v436, %v495
        %v497 = vmul.f32 %v437, %v495
        %v498 = vmul.f32 %v438, %v495
        %v499 = vmul.f32 %v439, %v495
        %v500 = vmul.f32 %v440, %v495
        %v501 = vmul.f32 %v441, %v495
        %v502 = vmul.f32 %v442, %v495
        %v503 = vmul.f32 %v443, %v495
        %v504 = vadd.f32 %v484, %v496
        %v505 = vadd.f32 %v485, %v497
        %v506 = vadd.f32 %v486, %v498
        %v507 = vadd.f32 %v487, %v499
        %v508 = vadd.f32 %v488, %v500
        %v509 = vadd.f32 %v489, %v501
        %v510 = vadd.f32 %v490, %v502
        %v511 = vadd.f32 %v491, %v503
        %v512 = vlaneseq
        %v513 = vshrl.u32 %v512, 7
        %v514 = vsub.s32 2, %v513
        %v515 = vrot.slane %v469, %v514
        %v516 = vmul.f32 %v418, %v515
        %v517 = vmul.f32 %v419, %v515
        %v518 = vmul.f32 %v420, %v515
        %v519 = vmul.f32 %v421, %v515
        %v520 = vmul.f32 %v422, %v515
        %v521 = vmul.f32 %v423, %v515
        %v522 = vmul.f32 %v424, %v515
        %v523 = vmul.f32 %v425, %v515
        %v524 = vmul.f32 %v426, %v515
        %v525 = vmul.f32 %v427, %v515
        %v526 = vmul.f32 %v428, %v515
        %v527 = vmul.f32 %v429, %v515
        %v528 = vmul.f32 %v430, %v515
        %v529 = vmul.f32 %v431, %v515
        %v530 = vmul.f32 %v432, %v515
        %v531 = vmul.f32 %v433, %v515
        %vm548 = vcmask 1046528
        %v549 = vrot.slane %v516, 1
        %v550 = vrot.slane %v517, 1
        %v551 = vsel %vm548, %v549, %v550
        %v552 = vrot.slane %v518, 1
        %v553 = vrot.slane %v519, 1
        %v554 = vsel %vm548, %v552, %v553
        %v555 = vrot.slane %v520, 1
        %v556 = vrot.slane %v521, 1
        %v557 = vsel %vm548, %v555, %v556
        %v558 = vrot.slane %v522, 1
        %v559 = vrot.slane %v523, 1
        %v560 = vsel %vm548, %v558, %v559
        %v561 = vrot.slane %v524, 1
        %v562 = vrot.slane %v525, 1
        %v563 = vsel %vm548, %v561, %v562
        %v564 = vrot.slane %v526, 1
        %v565 = vrot.slane %v527, 1
        %v566 = vsel %vm548, %v564, %v565
        %v567 = vrot.slane %v528, 1
        %v568 = vrot.slane %v529, 1
        %v569 = vsel %vm548, %v567, %v568
        %v570 = vrot.slane %v530, 1
        %v571 = vrot.slane %v531, 1
        %v572 = vsel %vm548, %v570, %v571
        %v581 = vadd.f32 %v504, %v551
        %v582 = vadd.f32 %v505, %v554
        %v583 = vadd.f32 %v506, %v557
        %v584 = vadd.f32 %v507, %v560
        %v585 = vadd.f32 %v508, %v563
        %v586 = vadd.f32 %v509, %v566
        %v587 = vadd.f32 %v510, %v569
        %v588 = vadd.f32 %v511, %v572
        %v589 = vlaneseq
        %v590 = vshrl.u32 %v589, 7
        %v591 = vsub.s32 0, %v590
        %v592 = vrot.slane %v470, %v591
        %v593 = vmul.f32 %v445, %v592
        %v594 = vmul.f32 %v447, %v592
        %v595 = vmul.f32 %v449, %v592
        %v596 = vmul.f32 %v451, %v592
        %v597 = vmul.f32 %v453, %v592
        %v598 = vmul.f32 %v455, %v592
        %v599 = vmul.f32 %v457, %v592
        %v600 = vmul.f32 %v459, %v592
        %v601 = vadd.f32 %v581, %v593
        %v602 = vadd.f32 %v582, %v594
        %v603 = vadd.f32 %v583, %v595
        %v604 = vadd.f32 %v584, %v596
        %v605 = vadd.f32 %v585, %v597
        %v606 = vadd.f32 %v586, %v598
        %v607 = vadd.f32 %v587, %v599
        %v608 = vadd.f32 %v588, %v600
        %v609 = vlaneseq
        %v610 = vshrl.u32 %v609, 7
        %v611 = vsub.s32 1, %v610
        %v612 = vrot.slane %v470, %v611
        %v613 = vmul.f32 %v461, %v612
        %v614 = vmul.f32 %v462, %v612
        %v615 = vmul.f32 %v463, %v612
        %v616 = vmul.f32 %v464, %v612
        %v617 = vmul.f32 %v465, %v612
        %v618 = vmul.f32 %v466, %v612
        %v619 = vmul.f32 %v467, %v612
        %v620 = vmul.f32 %v468, %v612
        %v621 = vadd.f32 %v601, %v613
        %v622 = vadd.f32 %v602, %v614
        %v623 = vadd.f32 %v603, %v615
        %v624 = vadd.f32 %v604, %v616
        %v625 = vadd.f32 %v605, %v617
        %v626 = vadd.f32 %v606, %v618
        %v627 = vadd.f32 %v607, %v619
        %v628 = vadd.f32 %v608, %v620
        %v629 = vlaneseq
        %v630 = vshrl.u32 %v629, 7
        %v631 = vsub.s32 2, %v630
        %v632 = vrot.slane %v470, %v631
        %v633 = vmul.f32 %v445, %v632
        %v634 = vmul.f32 %v446, %v632
        %v635 = vmul.f32 %v447, %v632
        %v636 = vmul.f32 %v448, %v632
        %v637 = vmul.f32 %v449, %v632
        %v638 = vmul.f32 %v450, %v632
        %v639 = vmul.f32 %v451, %v632
        %v640 = vmul.f32 %v452, %v632
        %v641 = vmul.f32 %v453, %v632
        %v642 = vmul.f32 %v454, %v632
        %v643 = vmul.f32 %v455, %v632
        %v644 = vmul.f32 %v456, %v632
        %v645 = vmul.f32 %v457, %v632
        %v646 = vmul.f32 %v458, %v632
        %v647 = vmul.f32 %v459, %v632
        %v648 = vmul.f32 %v460, %v632
        %v665 = vrot.slane %v633, 1
        %v666 = vrot.slane %v634, 1
        %v667 = vsel %vm548, %v665, %v666
        %v668 = vrot.slane %v635, 1
        %v669 = vrot.slane %v636, 1
        %v670 = vsel %vm548, %v668, %v669
        %v671 = vrot.slane %v637, 1
        %v672 = vrot.slane %v638, 1
        %v673 = vsel %vm548, %v671, %v672
        %v674 = vrot.slane %v639, 1
        %v675 = vrot.slane %v640, 1
        %v676 = vsel %vm548, %v674, %v675
        %v677 = vrot.slane %v641, 1
        %v678 = vrot.slane %v642, 1
        %v679 = vsel %vm548, %v677, %v678
        %v680 = vrot.slane %v643, 1
        %v681 = vrot.slane %v644, 1
        %v682 = vsel %vm548, %v680, %v681
        %v683 = vrot.slane %v645, 1
        %v684 = vrot.slane %v646, 1
        %v685 = vsel %vm548, %v683, %v684
        %v686 = vrot.slane %v647, 1
        %v687 = vrot.slane %v648, 1
        %v688 = vsel %vm548, %v686, %v687
        %v697 = vadd.f32 %v621, %v667
        %v698 = vadd.f32 %v622, %v670
        %v699 = vadd.f32 %v623, %v673
        %v700 = vadd.f32 %v624, %v676
        %v701 = vadd.f32 %v625, %v679
        %v702 = vadd.f32 %v626, %v682
        %v703 = vadd.f32 %v627, %v685
        %v704 = vadd.f32 %v628, %v688
        %v705 = vlaneseq
        %v706 = vshrl.u32 %v705, 7
        %v707 = vsub.s32 0, %v706
        %v708 = vrot.slane %v471, %v707
        %v709 = vmul.f32 %v420, %v708
        %v710 = vmul.f32 %v422, %v708
        %v711 = vmul.f32 %v424, %v708
        %v712 = vmul.f32 %v426, %v708
        %v713 = vmul.f32 %v428, %v708
        %v714 = vmul.f32 %v430, %v708
        %v715 = vmul.f32 %v432, %v708
        %v716 = vmul.f32 %v434, %v708
        %v717 = vadd.f32 %v697, %v709
        %v718 = vadd.f32 %v698, %v710
        %v719 = vadd.f32 %v699, %v711
        %v720 = vadd.f32 %v700, %v712
        %v721 = vadd.f32 %v701, %v713
        %v722 = vadd.f32 %v702, %v714
        %v723 = vadd.f32 %v703, %v715
        %v724 = vadd.f32 %v704, %v716
        %v725 = vlaneseq
        %v726 = vshrl.u32 %v725, 7
        %v727 = vsub.s32 1, %v726
        %v728 = vrot.slane %v471, %v727
        %v729 = vmul.f32 %v437, %v728
        %v730 = vmul.f32 %v438, %v728
        %v731 = vmul.f32 %v439, %v728
        %v732 = vmul.f32 %v440, %v728
        %v733 = vmul.f32 %v441, %v728
        %v734 = vmul.f32 %v442, %v728
        %v735 = vmul.f32 %v443, %v728
        %v736 = vmul.f32 %v444, %v728
        %v737 = vadd.f32 %v717, %v729
        %v738 = vadd.f32 %v718, %v730
        %v739 = vadd.f32 %v719, %v731
        %v740 = vadd.f32 %v720, %v732
        %v741 = vadd.f32 %v721, %v733
        %v742 = vadd.f32 %v722, %v734
        %v743 = vadd.f32 %v723, %v735
        %v744 = vadd.f32 %v724, %v736
        %v745 = vlaneseq
        %v746 = vshrl.u32 %v745, 7
        %v747 = vsub.s32 2, %v746
        %v748 = vrot.slane %v471, %v747
        %v749 = vmul.f32 %v420, %v748
        %v750 = vmul.f32 %v421, %v748
        %v751 = vmul.f32 %v422, %v748
        %v752 = vmul.f32 %v423, %v748
        %v753 = vmul.f32 %v424, %v748
        %v754 = vmul.f32 %v425, %v748
        %v755 = vmul.f32 %v426, %v748
        %v756 = vmul.f32 %v427, %v748
        %v757 = vmul.f32 %v428, %v748
        %v758 = vmul.f32 %v429, %v748
        %v759 = vmul.f32 %v430, %v748
        %v760 = vmul.f32 %v431, %v748
        %v761 = vmul.f32 %v432, %v748
        %v762 = vmul.f32 %v433, %v748
        %v763 = vmul.f32 %v434, %v748
        %v764 = vmul.f32 %v435, %v748
        %v781 = vrot.slane %v749, 1
        %v782 = vrot.slane %v750, 1
        %v783 = vsel %vm548, %v781, %v782
        %v784 = vrot.slane %v751, 1
        %v785 = vrot.slane %v752, 1
        %v786 = vsel %vm548, %v784, %v785
        %v787 = vrot.slane %v753, 1
        %v788 = vrot.slane %v754, 1
        %v789 = vsel %vm548, %v787, %v788
        %v790 = vrot.slane %v755, 1
        %v791 = vrot.slane %v756, 1
        %v792 = vsel %vm548, %v790, %v791
        %v793 = vrot.slane %v757, 1
        %v794 = vrot.slane %v758, 1
        %v795 = vsel %vm548, %v793, %v794
        %v796 = vrot.slane %v759, 1
        %v797 = vrot.slane %v760, 1
        %v798 = vsel %vm548, %v796, %v797
        %v799 = vrot.slane %v761, 1
        %v800 = vrot.slane %v762, 1
        %v801 = vsel %vm548, %v799, %v800
        %v802 = vrot.slane %v763, 1
        %v803 = vrot.slane %v764, 1
        %v804 = vsel %vm548, %v802, %v803
        %v813 = vadd.f32 %v737, %v783
        %v814 = vadd.f32 %v738, %v786
        %v815 = vadd.f32 %v739, %v789
        %v816 = vadd.f32 %v740, %v792
        %v817 = vadd.f32 %v741, %v795
        %v818 = vadd.f32 %v742, %v798
        %v819 = vadd.f32 %v743, %v801
        %v820 = vadd.f32 %v744, %v804
        %v821 = vld [vmem:[%s5] sm:$0x1]
        %v823 = vlaneseq
        %v824 = vshrl.u32 %v823, 7
        %v825 = vsub.s32 0, %v824
        %v826 = vrot.slane %v821, %v825
        %v828 = vmul.f32 %v813, %v826
        %v829 = vmul.f32 %v814, %v826
        %v830 = vmul.f32 %v815, %v826
        %v831 = vmul.f32 %v816, %v826
        %v832 = vmul.f32 %v817, %v826
        %v833 = vmul.f32 %v818, %v826
        %v834 = vmul.f32 %v819, %v826
        %v835 = vmul.f32 %v820, %v826
        %v836 = vld [vmem:[%s6] sm:$0x1]
        %v838 = vlaneseq
        %v839 = vshrl.u32 %v838, 7
        %v840 = vsub.s32 0, %v839
        %v841 = vrot.slane %v836, %v840
        %v843 = vadd.f32 %v828, %v841
        %v844 = vadd.f32 %v829, %v841
        %v845 = vadd.f32 %v830, %v841
        %v846 = vadd.f32 %v831, %v841
        %v847 = vadd.f32 %v832, %v841
        %v848 = vadd.f32 %v833, %v841
        %v849 = vadd.f32 %v834, %v841
        %v850 = vadd.f32 %v835, %v841
        %v851 = vmax.f32 %v843, 0.0
        %v852 = vmax.f32 %v844, 0.0
        %v853 = vmax.f32 %v845, 0.0
        %v854 = vmax.f32 %v846, 0.0
        %v855 = vmax.f32 %v847, 0.0
        %v856 = vmax.f32 %v848, 0.0
        %v857 = vmax.f32 %v849, 0.0
        %v858 = vmax.f32 %v850, 0.0
        %v859 = vld [vmem:[%s7] sm:$0xf]
        %vm860 = vcmask 31744
        %v862 = vsel %vm860, %v851, 0
        %v865 = vsel %vm860, %v852, 0
        %v868 = vsel %vm860, %v853, 0
        %v871 = vsel %vm860, %v854, 0
        %v874 = vsel %vm860, %v855, 0
        %v877 = vsel %vm860, %v856, 0
        %v880 = vsel %vm860, %v857, 0
        %v883 = vsel %vm860, %v858, 0
        %vm885 = vcmask 1043456
        %v887 = vsel %vm885, %v859, 0
        %889 = vmatprep.subr.mxu0 0.0
        %v890 = vand.u32 %v887, 4294901760
        %891 = vmatpush1.msra.mxu0 %v890
        %892 = vmatprep.subr.mxu0 0.0
        %893 = vmatpush1.msra.mxu0 0.0
        %894 = vmatprep.subr.mxu0 0.0
        %895 = vmatpush1.msra.mxu0 0.0
        %896 = vmatprep.subr.mxu0 0.0
        %897 = vmatpush1.msra.mxu0 0.0
        %898 = vmatprep.subr.mxu0 0.0
        %899 = vmatpush1.msra.mxu0 0.0
        %900 = vmatprep.subr.mxu0 0.0
        %901 = vmatpush1.msra.mxu0 0.0
        %902 = vmatprep.subr.mxu0 0.0
        %903 = vmatpush1.msra.mxu0 0.0
        %904 = vmatprep.subr.mxu0 0.0
        %905 = vmatpush1.msra.mxu0 0.0
        %906 = vmatprep.subr.mxu0 0.0
        %907 = vmatpush1.msra.mxu0 0.0
        %908 = vmatprep.subr.mxu0 0.0
        %909 = vmatpush1.msra.mxu0 0.0
        %910 = vmatprep.subr.mxu0 0.0
        %911 = vmatpush1.msra.mxu0 0.0
        %912 = vmatprep.subr.mxu0 0.0
        %913 = vmatpush1.msra.mxu0 0.0
        %914 = vmatprep.subr.mxu0 0.0
        %915 = vmatpush1.msra.mxu0 0.0
        %916 = vmatprep.subr.mxu0 0.0
        %917 = vmatpush1.msra.mxu0 0.0
        %918 = vmatprep.subr.mxu0 0.0
        %919 = vmatpush1.msra.mxu0 0.0
        %920 = vmatprep.subr.mxu0 0.0
        %921 = vmatpush1.msra.mxu0 0.0
        %922 = vmatprep.subr.mxu0 0.0
        %923 = vmatpush1.msra.mxu0 0.0
        %924 = vmatprep.subr.mxu0 0.0
        %925 = vmatpush1.msra.mxu0 0.0
        %926 = vmatprep.subr.mxu0 0.0
        %927 = vmatpush1.msra.mxu0 0.0
        %928 = vmatprep.subr.mxu0 0.0
        %929 = vmatpush1.msra.mxu0 0.0
        %930 = vmatprep.subr.mxu0 0.0
        %931 = vmatpush1.msra.mxu0 0.0
        %932 = vmatprep.subr.mxu0 0.0
        %933 = vmatpush1.msra.mxu0 0.0
        %934 = vmatprep.subr.mxu0 0.0
        %935 = vmatpush1.msra.mxu0 0.0
        %936 = vmatprep.subr.mxu0 0.0
        %937 = vmatpush1.msra.mxu0 0.0
        %938 = vmatprep.subr.mxu0 0.0
        %939 = vmatpush1.msra.mxu0 0.0
        %940 = vmatprep.subr.mxu0 0.0
        %941 = vmatpush1.msra.mxu0 0.0
        %942 = vmatprep.subr.mxu0 0.0
        %943 = vmatpush1.msra.mxu0 0.0
        %944 = vmatprep.subr.mxu0 0.0
        %945 = vmatpush1.msra.mxu0 0.0
        %946 = vmatprep.subr.mxu0 0.0
        %947 = vmatpush1.msra.mxu0 0.0
        %948 = vmatprep.subr.mxu0 0.0
        %949 = vmatpush1.msra.mxu0 0.0
        %950 = vmatprep.subr.mxu0 0.0
        %951 = vmatpush1.msra.mxu0 0.0
        %952 = vmatprep.subr.mxu0 0.0
        %953 = vmatpush1.msra.mxu0 0.0
        %954 = vmatprep.mubr.f32.mxu0 0.0
        %v955 = vand.u32 %v862, 4294901760
        %v956 = vsub.f32 %v862, %v955
        %v957 = vand.u32 %v956, 4294901760
        %v958 = vsub.f32 %v956, %v957
        %v959 = vand.u32 %v958, 4294901760
        %960 = vmatmul.mubr.f32.gmra.mrb[0].mxu0 %v959
        %v961 = vpop.f32.mrb[0].mxu0
        %v962 = vadd.f32 0.0, %v961
        %v963 = vpop.f32.mrb[0].mxu0
        %964 = vmatprep.mubr.f32.mxu0 0.0
        %v965 = vand.u32 %v865, 4294901760
        %v966 = vsub.f32 %v865, %v965
        %v967 = vand.u32 %v966, 4294901760
        %v968 = vsub.f32 %v966, %v967
        %v969 = vand.u32 %v968, 4294901760
        %970 = vmatmul.mubr.f32.gmra.mrb[0].mxu0 %v969
        %v971 = vpop.f32.mrb[0].mxu0
        %v972 = vadd.f32 0.0, %v971
        %v973 = vpop.f32.mrb[0].mxu0
        %974 = vmatprep.mubr.f32.mxu0 0.0
        %v975 = vand.u32 %v868, 4294901760
        %v976 = vsub.f32 %v868, %v975
        %v977 = vand.u32 %v976, 4294901760
        %v978 = vsub.f32 %v976, %v977
        %v979 = vand.u32 %v978, 4294901760
        %980 = vmatmul.mubr.f32.gmra.mrb[0].mxu0 %v979
        %v981 = vpop.f32.mrb[0].mxu0
        %v982 = vadd.f32 0.0, %v981
        %v983 = vpop.f32.mrb[0].mxu0
        %984 = vmatprep.mubr.f32.mxu0 0.0
        %v985 = vand.u32 %v871, 4294901760
        %v986 = vsub.f32 %v871, %v985
        %v987 = vand.u32 %v986, 4294901760
        %v988 = vsub.f32 %v986, %v987
        %v989 = vand.u32 %v988, 4294901760
        %990 = vmatmul.mubr.f32.gmra.mrb[0].mxu0 %v989
        %v991 = vpop.f32.mrb[0].mxu0
        %v992 = vadd.f32 0.0, %v991
        %v993 = vpop.f32.mrb[0].mxu0
        %994 = vmatprep.mubr.f32.mxu0 0.0
        %v995 = vand.u32 %v874, 4294901760
        %v996 = vsub.f32 %v874, %v995
        %v997 = vand.u32 %v996, 4294901760
        %v998 = vsub.f32 %v996, %v997
        %v999 = vand.u32 %v998, 4294901760
        %1000 = vmatmul.mubr.f32.gmra.mrb[0].mxu0 %v999
        %v1001 = vpop.f32.mrb[0].mxu0
        %v1002 = vadd.f32 0.0, %v1001
        %v1003 = vpop.f32.mrb[0].mxu0
        %1004 = vmatprep.mubr.f32.mxu0 0.0
        %v1005 = vand.u32 %v877, 4294901760
        %v1006 = vsub.f32 %v877, %v1005
        %v1007 = vand.u32 %v1006, 4294901760
        %v1008 = vsub.f32 %v1006, %v1007
        %v1009 = vand.u32 %v1008, 4294901760
        %1010 = vmatmul.mubr.f32.gmra.mrb[0].mxu0 %v1009
        %v1011 = vpop.f32.mrb[0].mxu0
        %v1012 = vadd.f32 0.0, %v1011
        %v1013 = vpop.f32.mrb[0].mxu0
        %1014 = vmatprep.mubr.f32.mxu0 0.0
        %v1015 = vand.u32 %v880, 4294901760
        %v1016 = vsub.f32 %v880, %v1015
        %v1017 = vand.u32 %v1016, 4294901760
        %v1018 = vsub.f32 %v1016, %v1017
        %v1019 = vand.u32 %v1018, 4294901760
        %1020 = vmatmul.mubr.f32.gmra.mrb[0].mxu0 %v1019
        %v1021 = vpop.f32.mrb[0].mxu0
        %v1022 = vadd.f32 0.0, %v1021
        %v1023 = vpop.f32.mrb[0].mxu0
        %1024 = vmatprep.mubr.f32.mxu0 0.0
        %v1025 = vand.u32 %v883, 4294901760
        %v1026 = vsub.f32 %v883, %v1025
        %v1027 = vand.u32 %v1026, 4294901760
        %v1028 = vsub.f32 %v1026, %v1027
        %v1029 = vand.u32 %v1028, 4294901760
        %1030 = vmatmul.mubr.f32.gmra.mrb[0].mxu0 %v1029
        %v1031 = vpop.f32.mrb[0].mxu0
        %v1032 = vadd.f32 0.0, %v1031
        %v1033 = vpop.f32.mrb[0].mxu0
        %1034 = vdwg.mxu0
        %1035 = vmatprep.subr.mxu0 0.0
        %v1036 = vand.u32 %v887, 4294901760
        %v1037 = vsub.f32 %v887, %v1036
        %v1038 = vand.u32 %v1037, 4294901760
        %v1039 = vsub.f32 %v1037, %v1038
        %v1040 = vand.u32 %v1039, 4294901760
        %1041 = vmatpush1.msra.mxu0 %v1040
        %1042 = vmatprep.subr.mxu0 0.0
        %1043 = vmatpush1.msra.mxu0 0.0
        %1044 = vmatprep.subr.mxu0 0.0
        %1045 = vmatpush1.msra.mxu0 0.0
        %1046 = vmatprep.subr.mxu0 0.0
        %1047 = vmatpush1.msra.mxu0 0.0
        %1048 = vmatprep.subr.mxu0 0.0
        %1049 = vmatpush1.msra.mxu0 0.0
        %1050 = vmatprep.subr.mxu0 0.0
        %1051 = vmatpush1.msra.mxu0 0.0
        %1052 = vmatprep.subr.mxu0 0.0
        %1053 = vmatpush1.msra.mxu0 0.0
        %1054 = vmatprep.subr.mxu0 0.0
        %1055 = vmatpush1.msra.mxu0 0.0
        %1056 = vmatprep.subr.mxu0 0.0
        %1057 = vmatpush1.msra.mxu0 0.0
        %1058 = vmatprep.subr.mxu0 0.0
        %1059 = vmatpush1.msra.mxu0 0.0
        %1060 = vmatprep.subr.mxu0 0.0
        %1061 = vmatpush1.msra.mxu0 0.0
        %1062 = vmatprep.subr.mxu0 0.0
        %1063 = vmatpush1.msra.mxu0 0.0
        %1064 = vmatprep.subr.mxu0 0.0
        %1065 = vmatpush1.msra.mxu0 0.0
        %1066 = vmatprep.subr.mxu0 0.0
        %1067 = vmatpush1.msra.mxu0 0.0
        %1068 = vmatprep.subr.mxu0 0.0
        %1069 = vmatpush1.msra.mxu0 0.0
        %1070 = vmatprep.subr.mxu0 0.0
        %1071 = vmatpush1.msra.mxu0 0.0
        %1072 = vmatprep.subr.mxu0 0.0
        %1073 = vmatpush1.msra.mxu0 0.0
        %1074 = vmatprep.subr.mxu0 0.0
        %1075 = vmatpush1.msra.mxu0 0.0
        %1076 = vmatprep.subr.mxu0 0.0
        %1077 = vmatpush1.msra.mxu0 0.0
        %1078 = vmatprep.subr.mxu0 0.0
        %1079 = vmatpush1.msra.mxu0 0.0
        %1080 = vmatprep.subr.mxu0 0.0
        %1081 = vmatpush1.msra.mxu0 0.0
        %1082 = vmatprep.subr.mxu0 0.0
        %1083 = vmatpush1.msra.mxu0 0.0
        %1084 = vmatprep.subr.mxu0 0.0
        %1085 = vmatpush1.msra.mxu0 0.0
        %1086 = vmatprep.subr.mxu0 0.0
        %1087 = vmatpush1.msra.mxu0 0.0
        %1088 = vmatprep.subr.mxu0 0.0
        %1089 = vmatpush1.msra.mxu0 0.0
        %1090 = vmatprep.subr.mxu0 0.0
        %1091 = vmatpush1.msra.mxu0 0.0
        %1092 = vmatprep.subr.mxu0 0.0
        %1093 = vmatpush1.msra.mxu0 0.0
        %1094 = vmatprep.subr.mxu0 0.0
        %1095 = vmatpush1.msra.mxu0 0.0
        %1096 = vmatprep.subr.mxu0 0.0
        %1097 = vmatpush1.msra.mxu0 0.0
        %1098 = vmatprep.subr.mxu0 0.0
        %1099 = vmatpush1.msra.mxu0 0.0
        %1100 = vmatprep.subr.mxu0 0.0
        %1101 = vmatpush1.msra.mxu0 0.0
        %1102 = vmatprep.subr.mxu0 0.0
        %1103 = vmatpush1.msra.mxu0 0.0
        %1104 = vmatprep.mubr.f32.mxu0 0.0
        %v1105 = vand.u32 %v862, 4294901760
        %1106 = vmatmul.mubr.f32.gmra.mrb[0].mxu0 %v1105
        %v1107 = vpop.f32.mrb[0].mxu0
        %v1108 = vadd.f32 %v962, %v1107
        %v1109 = vpop.f32.mrb[0].mxu0
        %1110 = vmatprep.mubr.f32.mxu0 0.0
        %v1111 = vand.u32 %v865, 4294901760
        %1112 = vmatmul.mubr.f32.gmra.mrb[0].mxu0 %v1111
        %v1113 = vpop.f32.mrb[0].mxu0
        %v1114 = vadd.f32 %v972, %v1113
        %v1115 = vpop.f32.mrb[0].mxu0
        %1116 = vmatprep.mubr.f32.mxu0 0.0
        %v1117 = vand.u32 %v868, 4294901760
        %1118 = vmatmul.mubr.f32.gmra.mrb[0].mxu0 %v1117
        %v1119 = vpop.f32.mrb[0].mxu0
        %v1120 = vadd.f32 %v982, %v1119
        %v1121 = vpop.f32.mrb[0].mxu0
        %1122 = vmatprep.mubr.f32.mxu0 0.0
        %v1123 = vand.u32 %v871, 4294901760
        %1124 = vmatmul.mubr.f32.gmra.mrb[0].mxu0 %v1123
        %v1125 = vpop.f32.mrb[0].mxu0
        %v1126 = vadd.f32 %v992, %v1125
        %v1127 = vpop.f32.mrb[0].mxu0
        %1128 = vmatprep.mubr.f32.mxu0 0.0
        %v1129 = vand.u32 %v874, 4294901760
        %1130 = vmatmul.mubr.f32.gmra.mrb[0].mxu0 %v1129
        %v1131 = vpop.f32.mrb[0].mxu0
        %v1132 = vadd.f32 %v1002, %v1131
        %v1133 = vpop.f32.mrb[0].mxu0
        %1134 = vmatprep.mubr.f32.mxu0 0.0
        %v1135 = vand.u32 %v877, 4294901760
        %1136 = vmatmul.mubr.f32.gmra.mrb[0].mxu0 %v1135
        %v1137 = vpop.f32.mrb[0].mxu0
        %v1138 = vadd.f32 %v1012, %v1137
        %v1139 = vpop.f32.mrb[0].mxu0
        %1140 = vmatprep.mubr.f32.mxu0 0.0
        %v1141 = vand.u32 %v880, 4294901760
        %1142 = vmatmul.mubr.f32.gmra.mrb[0].mxu0 %v1141
        %v1143 = vpop.f32.mrb[0].mxu0
        %v1144 = vadd.f32 %v1022, %v1143
        %v1145 = vpop.f32.mrb[0].mxu0
        %1146 = vmatprep.mubr.f32.mxu0 0.0
        %v1147 = vand.u32 %v883, 4294901760
        %1148 = vmatmul.mubr.f32.gmra.mrb[0].mxu0 %v1147
        %v1149 = vpop.f32.mrb[0].mxu0
        %v1150 = vadd.f32 %v1032, %v1149
        %v1151 = vpop.f32.mrb[0].mxu0
        %1152 = vdwg.mxu0
        %1153 = vmatprep.subr.mxu0 0.0
        %v1154 = vand.u32 %v887, 4294901760
        %v1155 = vsub.f32 %v887, %v1154
        %1156 = vmatpush1.msra.mxu0 %v1155
        %1157 = vmatprep.subr.mxu0 0.0
        %1158 = vmatpush1.msra.mxu0 0.0
        %1159 = vmatprep.subr.mxu0 0.0
        %1160 = vmatpush1.msra.mxu0 0.0
        %1161 = vmatprep.subr.mxu0 0.0
        %1162 = vmatpush1.msra.mxu0 0.0
        %1163 = vmatprep.subr.mxu0 0.0
        %1164 = vmatpush1.msra.mxu0 0.0
        %1165 = vmatprep.subr.mxu0 0.0
        %1166 = vmatpush1.msra.mxu0 0.0
        %1167 = vmatprep.subr.mxu0 0.0
        %1168 = vmatpush1.msra.mxu0 0.0
        %1169 = vmatprep.subr.mxu0 0.0
        %1170 = vmatpush1.msra.mxu0 0.0
        %1171 = vmatprep.subr.mxu0 0.0
        %1172 = vmatpush1.msra.mxu0 0.0
        %1173 = vmatprep.subr.mxu0 0.0
        %1174 = vmatpush1.msra.mxu0 0.0
        %1175 = vmatprep.subr.mxu0 0.0
        %1176 = vmatpush1.msra.mxu0 0.0
        %1177 = vmatprep.subr.mxu0 0.0
        %1178 = vmatpush1.msra.mxu0 0.0
        %1179 = vmatprep.subr.mxu0 0.0
        %1180 = vmatpush1.msra.mxu0 0.0
        %1181 = vmatprep.subr.mxu0 0.0
        %1182 = vmatpush1.msra.mxu0 0.0
        %1183 = vmatprep.subr.mxu0 0.0
        %1184 = vmatpush1.msra.mxu0 0.0
        %1185 = vmatprep.subr.mxu0 0.0
        %1186 = vmatpush1.msra.mxu0 0.0
        %1187 = vmatprep.subr.mxu0 0.0
        %1188 = vmatpush1.msra.mxu0 0.0
        %1189 = vmatprep.subr.mxu0 0.0
        %1190 = vmatpush1.msra.mxu0 0.0
        %1191 = vmatprep.subr.mxu0 0.0
        %1192 = vmatpush1.msra.mxu0 0.0
        %1193 = vmatprep.subr.mxu0 0.0
        %1194 = vmatpush1.msra.mxu0 0.0
        %1195 = vmatprep.subr.mxu0 0.0
        %1196 = vmatpush1.msra.mxu0 0.0
        %1197 = vmatprep.subr.mxu0 0.0
        %1198 = vmatpush1.msra.mxu0 0.0
        %1199 = vmatprep.subr.mxu0 0.0
        %1200 = vmatpush1.msra.mxu0 0.0
        %1201 = vmatprep.subr.mxu0 0.0
        %1202 = vmatpush1.msra.mxu0 0.0
        %1203 = vmatprep.subr.mxu0 0.0
        %1204 = vmatpush1.msra.mxu0 0.0
        %1205 = vmatprep.subr.mxu0 0.0
        %1206 = vmatpush1.msra.mxu0 0.0
        %1207 = vmatprep.subr.mxu0 0.0
        %1208 = vmatpush1.msra.mxu0 0.0
        %1209 = vmatprep.subr.mxu0 0.0
        %1210 = vmatpush1.msra.mxu0 0.0
        %1211 = vmatprep.subr.mxu0 0.0
        %1212 = vmatpush1.msra.mxu0 0.0
        %1213 = vmatprep.subr.mxu0 0.0
        %1214 = vmatpush1.msra.mxu0 0.0
        %1215 = vmatprep.subr.mxu0 0.0
        %1216 = vmatpush1.msra.mxu0 0.0
        %1217 = vmatprep.subr.mxu0 0.0
        %1218 = vmatpush1.msra.mxu0 0.0
        %1219 = vmatprep.mubr.f32.mxu0 0.0
        %v1220 = vand.u32 %v862, 4294901760
        %v1221 = vsub.f32 %v862, %v1220
        %1222 = vmatmul.mubr.f32.gmra.mrb[0].mxu0 %v1221
        %v1223 = vpop.f32.mrb[0].mxu0
        %v1224 = vadd.f32 %v1108, %v1223
        %v1225 = vpop.f32.mrb[0].mxu0
        %1226 = vmatprep.mubr.f32.mxu0 0.0
        %v1227 = vand.u32 %v865, 4294901760
        %v1228 = vsub.f32 %v865, %v1227
        %1229 = vmatmul.mubr.f32.gmra.mrb[0].mxu0 %v1228
        %v1230 = vpop.f32.mrb[0].mxu0
        %v1231 = vadd.f32 %v1114, %v1230
        %v1232 = vpop.f32.mrb[0].mxu0
        %1233 = vmatprep.mubr.f32.mxu0 0.0
        %v1234 = vand.u32 %v868, 4294901760
        %v1235 = vsub.f32 %v868, %v1234
        %1236 = vmatmul.mubr.f32.gmra.mrb[0].mxu0 %v1235
        %v1237 = vpop.f32.mrb[0].mxu0
        %v1238 = vadd.f32 %v1120, %v1237
        %v1239 = vpop.f32.mrb[0].mxu0
        %1240 = vmatprep.mubr.f32.mxu0 0.0
        %v1241 = vand.u32 %v871, 4294901760
        %v1242 = vsub.f32 %v871, %v1241
        %1243 = vmatmul.mubr.f32.gmra.mrb[0].mxu0 %v1242
        %v1244 = vpop.f32.mrb[0].mxu0
        %v1245 = vadd.f32 %v1126, %v1244
        %v1246 = vpop.f32.mrb[0].mxu0
        %1247 = vmatprep.mubr.f32.mxu0 0.0
        %v1248 = vand.u32 %v874, 4294901760
        %v1249 = vsub.f32 %v874, %v1248
        %1250 = vmatmul.mubr.f32.gmra.mrb[0].mxu0 %v1249
        %v1251 = vpop.f32.mrb[0].mxu0
        %v1252 = vadd.f32 %v1132, %v1251
        %v1253 = vpop.f32.mrb[0].mxu0
        %1254 = vmatprep.mubr.f32.mxu0 0.0
        %v1255 = vand.u32 %v877, 4294901760
        %v1256 = vsub.f32 %v877, %v1255
        %1257 = vmatmul.mubr.f32.gmra.mrb[0].mxu0 %v1256
        %v1258 = vpop.f32.mrb[0].mxu0
        %v1259 = vadd.f32 %v1138, %v1258
        %v1260 = vpop.f32.mrb[0].mxu0
        %1261 = vmatprep.mubr.f32.mxu0 0.0
        %v1262 = vand.u32 %v880, 4294901760
        %v1263 = vsub.f32 %v880, %v1262
        %1264 = vmatmul.mubr.f32.gmra.mrb[0].mxu0 %v1263
        %v1265 = vpop.f32.mrb[0].mxu0
        %v1266 = vadd.f32 %v1144, %v1265
        %v1267 = vpop.f32.mrb[0].mxu0
        %1268 = vmatprep.mubr.f32.mxu0 0.0
        %v1269 = vand.u32 %v883, 4294901760
        %v1270 = vsub.f32 %v883, %v1269
        %1271 = vmatmul.mubr.f32.gmra.mrb[0].mxu0 %v1270
        %v1272 = vpop.f32.mrb[0].mxu0
        %v1273 = vadd.f32 %v1150, %v1272
        %v1274 = vpop.f32.mrb[0].mxu0
        %1275 = vdwg.mxu0
        %1276 = vmatprep.subr.mxu0 0.0
        %v1277 = vand.u32 %v887, 4294901760
        %1278 = vmatpush1.msra.mxu0 %v1277
        %1279 = vmatprep.subr.mxu0 0.0
        %1280 = vmatpush1.msra.mxu0 0.0
        %1281 = vmatprep.subr.mxu0 0.0
        %1282 = vmatpush1.msra.mxu0 0.0
        %1283 = vmatprep.subr.mxu0 0.0
        %1284 = vmatpush1.msra.mxu0 0.0
        %1285 = vmatprep.subr.mxu0 0.0
        %1286 = vmatpush1.msra.mxu0 0.0
        %1287 = vmatprep.subr.mxu0 0.0
        %1288 = vmatpush1.msra.mxu0 0.0
        %1289 = vmatprep.subr.mxu0 0.0
        %1290 = vmatpush1.msra.mxu0 0.0
        %1291 = vmatprep.subr.mxu0 0.0
        %1292 = vmatpush1.msra.mxu0 0.0
        %1293 = vmatprep.subr.mxu0 0.0
        %1294 = vmatpush1.msra.mxu0 0.0
        %1295 = vmatprep.subr.mxu0 0.0
        %1296 = vmatpush1.msra.mxu0 0.0
        %1297 = vmatprep.subr.mxu0 0.0
        %1298 = vmatpush1.msra.mxu0 0.0
        %1299 = vmatprep.subr.mxu0 0.0
        %1300 = vmatpush1.msra.mxu0 0.0
        %1301 = vmatprep.subr.mxu0 0.0
        %1302 = vmatpush1.msra.mxu0 0.0
        %1303 = vmatprep.subr.mxu0 0.0
        %1304 = vmatpush1.msra.mxu0 0.0
        %1305 = vmatprep.subr.mxu0 0.0
        %1306 = vmatpush1.msra.mxu0 0.0
        %1307 = vmatprep.subr.mxu0 0.0
        %1308 = vmatpush1.msra.mxu0 0.0
        %1309 = vmatprep.subr.mxu0 0.0
        %1310 = vmatpush1.msra.mxu0 0.0
        %1311 = vmatprep.subr.mxu0 0.0
        %1312 = vmatpush1.msra.mxu0 0.0
        %1313 = vmatprep.subr.mxu0 0.0
        %1314 = vmatpush1.msra.mxu0 0.0
        %1315 = vmatprep.subr.mxu0 0.0
        %1316 = vmatpush1.msra.mxu0 0.0
        %1317 = vmatprep.subr.mxu0 0.0
        %1318 = vmatpush1.msra.mxu0 0.0
        %1319 = vmatprep.subr.mxu0 0.0
        %1320 = vmatpush1.msra.mxu0 0.0
        %1321 = vmatprep.subr.mxu0 0.0
        %1322 = vmatpush1.msra.mxu0 0.0
        %1323 = vmatprep.subr.mxu0 0.0
        %1324 = vmatpush1.msra.mxu0 0.0
        %1325 = vmatprep.subr.mxu0 0.0
        %1326 = vmatpush1.msra.mxu0 0.0
        %1327 = vmatprep.subr.mxu0 0.0
        %1328 = vmatpush1.msra.mxu0 0.0
        %1329 = vmatprep.subr.mxu0 0.0
        %1330 = vmatpush1.msra.mxu0 0.0
        %1331 = vmatprep.subr.mxu0 0.0
        %1332 = vmatpush1.msra.mxu0 0.0
        %1333 = vmatprep.subr.mxu0 0.0
        %1334 = vmatpush1.msra.mxu0 0.0
        %1335 = vmatprep.subr.mxu0 0.0
        %1336 = vmatpush1.msra.mxu0 0.0
        %1337 = vmatprep.subr.mxu0 0.0
        %1338 = vmatpush1.msra.mxu0 0.0
        %1339 = vmatprep.subr.mxu0 0.0
        %1340 = vmatpush1.msra.mxu0 0.0
        %1341 = vmatprep.mubr.f32.mxu0 0.0
        %v1342 = vand.u32 %v862, 4294901760
        %v1343 = vsub.f32 %v862, %v1342
        %v1344 = vand.u32 %v1343, 4294901760
        %1345 = vmatmul.mubr.f32.gmra.mrb[0].mxu0 %v1344
        %v1346 = vpop.f32.mrb[0].mxu0
        %v1347 = vadd.f32 %v1224, %v1346
        %v1348 = vpop.f32.mrb[0].mxu0
        %1349 = vmatprep.mubr.f32.mxu0 0.0
        %v1350 = vand.u32 %v865, 4294901760
        %v1351 = vsub.f32 %v865, %v1350
        %v1352 = vand.u32 %v1351, 4294901760
        %1353 = vmatmul.mubr.f32.gmra.mrb[0].mxu0 %v1352
        %v1354 = vpop.f32.mrb[0].mxu0
        %v1355 = vadd.f32 %v1231, %v1354
        %v1356 = vpop.f32.mrb[0].mxu0
        %1357 = vmatprep.mubr.f32.mxu0 0.0
        %v1358 = vand.u32 %v868, 4294901760
        %v1359 = vsub.f32 %v868, %v1358
        %v1360 = vand.u32 %v1359, 4294901760
        %1361 = vmatmul.mubr.f32.gmra.mrb[0].mxu0 %v1360
        %v1362 = vpop.f32.mrb[0].mxu0
        %v1363 = vadd.f32 %v1238, %v1362
        %v1364 = vpop.f32.mrb[0].mxu0
        %1365 = vmatprep.mubr.f32.mxu0 0.0
        %v1366 = vand.u32 %v871, 4294901760
        %v1367 = vsub.f32 %v871, %v1366
        %v1368 = vand.u32 %v1367, 4294901760
        %1369 = vmatmul.mubr.f32.gmra.mrb[0].mxu0 %v1368
        %v1370 = vpop.f32.mrb[0].mxu0
        %v1371 = vadd.f32 %v1245, %v1370
        %v1372 = vpop.f32.mrb[0].mxu0
        %1373 = vmatprep.mubr.f32.mxu0 0.0
        %v1374 = vand.u32 %v874, 4294901760
        %v1375 = vsub.f32 %v874, %v1374
        %v1376 = vand.u32 %v1375, 4294901760
        %1377 = vmatmul.mubr.f32.gmra.mrb[0].mxu0 %v1376
        %v1378 = vpop.f32.mrb[0].mxu0
        %v1379 = vadd.f32 %v1252, %v1378
        %v1380 = vpop.f32.mrb[0].mxu0
        %1381 = vmatprep.mubr.f32.mxu0 0.0
        %v1382 = vand.u32 %v877, 4294901760
        %v1383 = vsub.f32 %v877, %v1382
        %v1384 = vand.u32 %v1383, 4294901760
        %1385 = vmatmul.mubr.f32.gmra.mrb[0].mxu0 %v1384
        %v1386 = vpop.f32.mrb[0].mxu0
        %v1387 = vadd.f32 %v1259, %v1386
        %v1388 = vpop.f32.mrb[0].mxu0
        %1389 = vmatprep.mubr.f32.mxu0 0.0
        %v1390 = vand.u32 %v880, 4294901760
        %v1391 = vsub.f32 %v880, %v1390
        %v1392 = vand.u32 %v1391, 4294901760
        %1393 = vmatmul.mubr.f32.gmra.mrb[0].mxu0 %v1392
        %v1394 = vpop.f32.mrb[0].mxu0
        %v1395 = vadd.f32 %v1266, %v1394
        %v1396 = vpop.f32.mrb[0].mxu0
        %1397 = vmatprep.mubr.f32.mxu0 0.0
        %v1398 = vand.u32 %v883, 4294901760
        %v1399 = vsub.f32 %v883, %v1398
        %v1400 = vand.u32 %v1399, 4294901760
        %1401 = vmatmul.mubr.f32.gmra.mrb[0].mxu0 %v1400
        %v1402 = vpop.f32.mrb[0].mxu0
        %v1403 = vadd.f32 %v1273, %v1402
        %v1404 = vpop.f32.mrb[0].mxu0
        %1405 = vdwg.mxu0
        %1406 = vmatprep.subr.mxu0 0.0
        %v1407 = vand.u32 %v887, 4294901760
        %v1408 = vsub.f32 %v887, %v1407
        %v1409 = vand.u32 %v1408, 4294901760
        %1410 = vmatpush1.msra.mxu0 %v1409
        %1411 = vmatprep.subr.mxu0 0.0
        %1412 = vmatpush1.msra.mxu0 0.0
        %1413 = vmatprep.subr.mxu0 0.0
        %1414 = vmatpush1.msra.mxu0 0.0
        %1415 = vmatprep.subr.mxu0 0.0
        %1416 = vmatpush1.msra.mxu0 0.0
        %1417 = vmatprep.subr.mxu0 0.0
        %1418 = vmatpush1.msra.mxu0 0.0
        %1419 = vmatprep.subr.mxu0 0.0
        %1420 = vmatpush1.msra.mxu0 0.0
        %1421 = vmatprep.subr.mxu0 0.0
        %1422 = vmatpush1.msra.mxu0 0.0
        %1423 = vmatprep.subr.mxu0 0.0
        %1424 = vmatpush1.msra.mxu0 0.0
        %1425 = vmatprep.subr.mxu0 0.0
        %1426 = vmatpush1.msra.mxu0 0.0
        %1427 = vmatprep.subr.mxu0 0.0
        %1428 = vmatpush1.msra.mxu0 0.0
        %1429 = vmatprep.subr.mxu0 0.0
        %1430 = vmatpush1.msra.mxu0 0.0
        %1431 = vmatprep.subr.mxu0 0.0
        %1432 = vmatpush1.msra.mxu0 0.0
        %1433 = vmatprep.subr.mxu0 0.0
        %1434 = vmatpush1.msra.mxu0 0.0
        %1435 = vmatprep.subr.mxu0 0.0
        %1436 = vmatpush1.msra.mxu0 0.0
        %1437 = vmatprep.subr.mxu0 0.0
        %1438 = vmatpush1.msra.mxu0 0.0
        %1439 = vmatprep.subr.mxu0 0.0
        %1440 = vmatpush1.msra.mxu0 0.0
        %1441 = vmatprep.subr.mxu0 0.0
        %1442 = vmatpush1.msra.mxu0 0.0
        %1443 = vmatprep.subr.mxu0 0.0
        %1444 = vmatpush1.msra.mxu0 0.0
        %1445 = vmatprep.subr.mxu0 0.0
        %1446 = vmatpush1.msra.mxu0 0.0
        %1447 = vmatprep.subr.mxu0 0.0
        %1448 = vmatpush1.msra.mxu0 0.0
        %1449 = vmatprep.subr.mxu0 0.0
        %1450 = vmatpush1.msra.mxu0 0.0
        %1451 = vmatprep.subr.mxu0 0.0
        %1452 = vmatpush1.msra.mxu0 0.0
        %1453 = vmatprep.subr.mxu0 0.0
        %1454 = vmatpush1.msra.mxu0 0.0
        %1455 = vmatprep.subr.mxu0 0.0
        %1456 = vmatpush1.msra.mxu0 0.0
        %1457 = vmatprep.subr.mxu0 0.0
        %1458 = vmatpush1.msra.mxu0 0.0
        %1459 = vmatprep.subr.mxu0 0.0
        %1460 = vmatpush1.msra.mxu0 0.0
        %1461 = vmatprep.subr.mxu0 0.0
        %1462 = vmatpush1.msra.mxu0 0.0
        %1463 = vmatprep.subr.mxu0 0.0
        %1464 = vmatpush1.msra.mxu0 0.0
        %1465 = vmatprep.subr.mxu0 0.0
        %1466 = vmatpush1.msra.mxu0 0.0
        %1467 = vmatprep.subr.mxu0 0.0
        %1468 = vmatpush1.msra.mxu0 0.0
        %1469 = vmatprep.subr.mxu0 0.0
        %1470 = vmatpush1.msra.mxu0 0.0
        %1471 = vmatprep.subr.mxu0 0.0
        %1472 = vmatpush1.msra.mxu0 0.0
        %1473 = vmatprep.mubr.f32.mxu0 0.0
        %v1474 = vand.u32 %v862, 4294901760
        %1475 = vmatmul.mubr.f32.gmra.mrb[0].mxu0 %v1474
        %v1476 = vpop.f32.mrb[0].mxu0
        %v1477 = vadd.f32 %v1347, %v1476
        %v1478 = vpop.f32.mrb[0].mxu0
        %1479 = vmatprep.mubr.f32.mxu0 0.0
        %v1480 = vand.u32 %v865, 4294901760
        %1481 = vmatmul.mubr.f32.gmra.mrb[0].mxu0 %v1480
        %v1482 = vpop.f32.mrb[0].mxu0
        %v1483 = vadd.f32 %v1355, %v1482
        %v1484 = vpop.f32.mrb[0].mxu0
        %1485 = vmatprep.mubr.f32.mxu0 0.0
        %v1486 = vand.u32 %v868, 4294901760
        %1487 = vmatmul.mubr.f32.gmra.mrb[0].mxu0 %v1486
        %v1488 = vpop.f32.mrb[0].mxu0
        %v1489 = vadd.f32 %v1363, %v1488
        %v1490 = vpop.f32.mrb[0].mxu0
        %1491 = vmatprep.mubr.f32.mxu0 0.0
        %v1492 = vand.u32 %v871, 4294901760
        %1493 = vmatmul.mubr.f32.gmra.mrb[0].mxu0 %v1492
        %v1494 = vpop.f32.mrb[0].mxu0
        %v1495 = vadd.f32 %v1371, %v1494
        %v1496 = vpop.f32.mrb[0].mxu0
        %1497 = vmatprep.mubr.f32.mxu0 0.0
        %v1498 = vand.u32 %v874, 4294901760
        %1499 = vmatmul.mubr.f32.gmra.mrb[0].mxu0 %v1498
        %v1500 = vpop.f32.mrb[0].mxu0
        %v1501 = vadd.f32 %v1379, %v1500
        %v1502 = vpop.f32.mrb[0].mxu0
        %1503 = vmatprep.mubr.f32.mxu0 0.0
        %v1504 = vand.u32 %v877, 4294901760
        %1505 = vmatmul.mubr.f32.gmra.mrb[0].mxu0 %v1504
        %v1506 = vpop.f32.mrb[0].mxu0
        %v1507 = vadd.f32 %v1387, %v1506
        %v1508 = vpop.f32.mrb[0].mxu0
        %1509 = vmatprep.mubr.f32.mxu0 0.0
        %v1510 = vand.u32 %v880, 4294901760
        %1511 = vmatmul.mubr.f32.gmra.mrb[0].mxu0 %v1510
        %v1512 = vpop.f32.mrb[0].mxu0
        %v1513 = vadd.f32 %v1395, %v1512
        %v1514 = vpop.f32.mrb[0].mxu0
        %1515 = vmatprep.mubr.f32.mxu0 0.0
        %v1516 = vand.u32 %v883, 4294901760
        %1517 = vmatmul.mubr.f32.gmra.mrb[0].mxu0 %v1516
        %v1518 = vpop.f32.mrb[0].mxu0
        %v1519 = vadd.f32 %v1403, %v1518
        %v1520 = vpop.f32.mrb[0].mxu0
        %1521 = vdwg.mxu0
        %1522 = vmatprep.subr.mxu0 0.0
        %v1523 = vand.u32 %v887, 4294901760
        %1524 = vmatpush1.msra.mxu0 %v1523
        %1525 = vmatprep.subr.mxu0 0.0
        %1526 = vmatpush1.msra.mxu0 0.0
        %1527 = vmatprep.subr.mxu0 0.0
        %1528 = vmatpush1.msra.mxu0 0.0
        %1529 = vmatprep.subr.mxu0 0.0
        %1530 = vmatpush1.msra.mxu0 0.0
        %1531 = vmatprep.subr.mxu0 0.0
        %1532 = vmatpush1.msra.mxu0 0.0
        %1533 = vmatprep.subr.mxu0 0.0
        %1534 = vmatpush1.msra.mxu0 0.0
        %1535 = vmatprep.subr.mxu0 0.0
        %1536 = vmatpush1.msra.mxu0 0.0
        %1537 = vmatprep.subr.mxu0 0.0
        %1538 = vmatpush1.msra.mxu0 0.0
        %1539 = vmatprep.subr.mxu0 0.0
        %1540 = vmatpush1.msra.mxu0 0.0
        %1541 = vmatprep.subr.mxu0 0.0
        %1542 = vmatpush1.msra.mxu0 0.0
        %1543 = vmatprep.subr.mxu0 0.0
        %1544 = vmatpush1.msra.mxu0 0.0
        %1545 = vmatprep.subr.mxu0 0.0
        %1546 = vmatpush1.msra.mxu0 0.0
        %1547 = vmatprep.subr.mxu0 0.0
        %1548 = vmatpush1.msra.mxu0 0.0
        %1549 = vmatprep.subr.mxu0 0.0
        %1550 = vmatpush1.msra.mxu0 0.0
        %1551 = vmatprep.subr.mxu0 0.0
        %1552 = vmatpush1.msra.mxu0 0.0
        %1553 = vmatprep.subr.mxu0 0.0
        %1554 = vmatpush1.msra.mxu0 0.0
        %1555 = vmatprep.subr.mxu0 0.0
        %1556 = vmatpush1.msra.mxu0 0.0
        %1557 = vmatprep.subr.mxu0 0.0
        %1558 = vmatpush1.msra.mxu0 0.0
        %1559 = vmatprep.subr.mxu0 0.0
        %1560 = vmatpush1.msra.mxu0 0.0
        %1561 = vmatprep.subr.mxu0 0.0
        %1562 = vmatpush1.msra.mxu0 0.0
        %1563 = vmatprep.subr.mxu0 0.0
        %1564 = vmatpush1.msra.mxu0 0.0
        %1565 = vmatprep.subr.mxu0 0.0
        %1566 = vmatpush1.msra.mxu0 0.0
        %1567 = vmatprep.subr.mxu0 0.0
        %1568 = vmatpush1.msra.mxu0 0.0
        %1569 = vmatprep.subr.mxu0 0.0
        %1570 = vmatpush1.msra.mxu0 0.0
        %1571 = vmatprep.subr.mxu0 0.0
        %1572 = vmatpush1.msra.mxu0 0.0
        %1573 = vmatprep.subr.mxu0 0.0
        %1574 = vmatpush1.msra.mxu0 0.0
        %1575 = vmatprep.subr.mxu0 0.0
        %1576 = vmatpush1.msra.mxu0 0.0
        %1577 = vmatprep.subr.mxu0 0.0
        %1578 = vmatpush1.msra.mxu0 0.0
        %1579 = vmatprep.subr.mxu0 0.0
        %1580 = vmatpush1.msra.mxu0 0.0
        %1581 = vmatprep.subr.mxu0 0.0
        %1582 = vmatpush1.msra.mxu0 0.0
        %1583 = vmatprep.subr.mxu0 0.0
        %1584 = vmatpush1.msra.mxu0 0.0
        %1585 = vmatprep.subr.mxu0 0.0
        %1586 = vmatpush1.msra.mxu0 0.0
        %1587 = vmatprep.mubr.f32.mxu0 0.0
        %v1588 = vand.u32 %v862, 4294901760
        %1589 = vmatmul.mubr.f32.gmra.mrb[0].mxu0 %v1588
        %v1590 = vpop.f32.mrb[0].mxu0
        %v1591 = vadd.f32 %v1477, %v1590
        %v1592 = vpop.f32.mrb[0].mxu0
        %1593 = vmatprep.mubr.f32.mxu0 0.0
        %v1594 = vand.u32 %v865, 4294901760
        %1595 = vmatmul.mubr.f32.gmra.mrb[0].mxu0 %v1594
        %v1596 = vpop.f32.mrb[0].mxu0
        %v1597 = vadd.f32 %v1483, %v1596
        %v1598 = vpop.f32.mrb[0].mxu0
        %1599 = vmatprep.mubr.f32.mxu0 0.0
        %v1600 = vand.u32 %v868, 4294901760
        %1601 = vmatmul.mubr.f32.gmra.mrb[0].mxu0 %v1600
        %v1602 = vpop.f32.mrb[0].mxu0
        %v1603 = vadd.f32 %v1489, %v1602
        %v1604 = vpop.f32.mrb[0].mxu0
        %1605 = vmatprep.mubr.f32.mxu0 0.0
        %v1606 = vand.u32 %v871, 4294901760
        %1607 = vmatmul.mubr.f32.gmra.mrb[0].mxu0 %v1606
        %v1608 = vpop.f32.mrb[0].mxu0
        %v1609 = vadd.f32 %v1495, %v1608
        %v1610 = vpop.f32.mrb[0].mxu0
        %1611 = vmatprep.mubr.f32.mxu0 0.0
        %v1612 = vand.u32 %v874, 4294901760
        %1613 = vmatmul.mubr.f32.gmra.mrb[0].mxu0 %v1612
        %v1614 = vpop.f32.mrb[0].mxu0
        %v1615 = vadd.f32 %v1501, %v1614
        %v1616 = vpop.f32.mrb[0].mxu0
        %1617 = vmatprep.mubr.f32.mxu0 0.0
        %v1618 = vand.u32 %v877, 4294901760
        %1619 = vmatmul.mubr.f32.gmra.mrb[0].mxu0 %v1618
        %v1620 = vpop.f32.mrb[0].mxu0
        %v1621 = vadd.f32 %v1507, %v1620
        %v1622 = vpop.f32.mrb[0].mxu0
        %1623 = vmatprep.mubr.f32.mxu0 0.0
        %v1624 = vand.u32 %v880, 4294901760
        %1625 = vmatmul.mubr.f32.gmra.mrb[0].mxu0 %v1624
        %v1626 = vpop.f32.mrb[0].mxu0
        %v1627 = vadd.f32 %v1513, %v1626
        %v1628 = vpop.f32.mrb[0].mxu0
        %1629 = vmatprep.mubr.f32.mxu0 0.0
        %v1630 = vand.u32 %v883, 4294901760
        %1631 = vmatmul.mubr.f32.gmra.mrb[0].mxu0 %v1630
        %v1632 = vpop.f32.mrb[0].mxu0
        %v1633 = vadd.f32 %v1519, %v1632
        %v1634 = vpop.f32.mrb[0].mxu0
        %1635 = vdwg.mxu0
        %v1636 = vld [vmem:[%s8] sm:$0x1]
        %v1638 = vlaneseq
        %v1639 = vshrl.u32 %v1638, 7
        %v1640 = vsub.s32 0, %v1639
        %v1641 = vrot.slane %v1636, %v1640
        %v1643 = vmul.f32 %v1591, %v1641
        %v1644 = vmul.f32 %v1597, %v1641
        %v1645 = vmul.f32 %v1603, %v1641
        %v1646 = vmul.f32 %v1609, %v1641
        %v1647 = vmul.f32 %v1615, %v1641
        %v1648 = vmul.f32 %v1621, %v1641
        %v1649 = vmul.f32 %v1627, %v1641
        %v1650 = vmul.f32 %v1633, %v1641
        %v1651 = vld [vmem:[%s9] sm:$0x1]
        %v1653 = vlaneseq
        %v1654 = vshrl.u32 %v1653, 7
        %v1655 = vsub.s32 0, %v1654
        %v1656 = vrot.slane %v1651, %v1655
        %v1658 = vadd.f32 %v1643, %v1656
        %v1659 = vadd.f32 %v1644, %v1656
        %v1660 = vadd.f32 %v1645, %v1656
        %v1661 = vadd.f32 %v1646, %v1656
        %v1662 = vadd.f32 %v1647, %v1656
        %v1663 = vadd.f32 %v1648, %v1656
        %v1664 = vadd.f32 %v1649, %v1656
        %v1665 = vadd.f32 %v1650, %v1656
        %v1666 = vmax.f32 %v1658, 0.0
        %v1667 = vmax.f32 %v1659, 0.0
        %v1668 = vmax.f32 %v1660, 0.0
        %v1669 = vmax.f32 %v1661, 0.0
        %v1670 = vmax.f32 %v1662, 0.0
        %v1671 = vmax.f32 %v1663, 0.0
        %v1672 = vmax.f32 %v1664, 0.0
        %v1673 = vmax.f32 %v1665, 0.0
        %vm1674 = vcmask 64512
        %1675 = vst.msk [vmem:[%s397] sm:$0xff] %vm1674, %v1666
        %1676 = vst.msk [vmem:[%s397 + $0x8] sm:$0xff] %vm1674, %v1667
        %1677 = vst.msk [vmem:[%s397 + $0x10] sm:$0xff] %vm1674, %v1668
        %1678 = vst.msk [vmem:[%s397 + $0x18] sm:$0xff] %vm1674, %v1669
        %1679 = vst.msk [vmem:[%s397 + $0x20] sm:$0xff] %vm1674, %v1670
        %1680 = vst.msk [vmem:[%s397 + $0x28] sm:$0xff] %vm1674, %v1671
        %1681 = vst.msk [vmem:[%s397 + $0x30] sm:$0xff] %vm1674, %v1672
        %1682 = vst.msk [vmem:[%s397 + $0x38] sm:$0xff] %vm1674, %v1673
        %s1683 = sand.u32 %s262, 1
        %s1684 = scalar_lea.sflag [#allocation3], %s1683
        %s1685 = sand.u32 %s262, 1
        %s1686 = smul.addr %s1685, 64
        %s1687 = scalar_lea.vmem [#allocation2], %s1686
        // Predicated region
        $region61: #{tpu_custom_call.1} parent=59 // pred_check
          %p1688 = pneg %p272
        $region62: #{tpu_custom_call.1} parent=59 // pred_check_branch
          %1690 = sbr.rel (%p1688) target = $region64
        $region63: #{tpu_custom_call.1} parent=59 // pred_region
          %s1692 = ssub.s32 1024, 1024
          %1693 = vsyncadd %s1684, %s1692
          %s1694 = smul.addr %s24, 8
          %s1695 = smul.addr %s1694, 128
          %s1696 = scalar_lea.hbm %s10, %s1695
          %s1697 = sshll.u32 %s1687, 4
          %s1698 = int_to_ptr.vmem [resolvable:$true] %s1697
          %1703 = dma.vmem_to_hbm [thread:$0]  %s1698, 1024, %s1696, %s1684, 128, 128, 8
        $region64: #{tpu_custom_call.1} parent=59 // pred_fallthru
          _
      $region60: #{tpu_custom_call.1} parent=5 // pred_fallthru
        _
      %p1704 = scmp.le.s32.totalorder 2, %s19
      // Predicated region
      $region65: #{tpu_custom_call.1} parent=5 // pred_check
        %p1705 = pneg %p1704
      $region66: #{tpu_custom_call.1} parent=5 // pred_check_branch
        %1707 = sbr.rel (%p1705) target = $region68
      $region67: #{tpu_custom_call.1} parent=5 // pred_region
        %s1708 = ssub.s32 %s19, 2
        // Predicated region
        $region69: #{tpu_custom_call.1} parent=67 // pred_check
          %p1709 = pneg %p278
        $region70: #{tpu_custom_call.1} parent=67 // pred_check_branch
          %1711 = sbr.rel (%p1709) target = $region72
        $region71: #{tpu_custom_call.1} parent=67 // pred_region
          %s1712 = sand.u32 %s263, 1
          %s1713 = scalar_lea.sflag [#allocation3], %s1712
          %s1714 = sand.u32 %s263, 1
          %s1715 = smul.addr %s1714, 64
          %s1716 = scalar_lea.vmem [#allocation2], %s1715
          %1717 = dma.done %s1713, 1024
        $region72: #{tpu_custom_call.1} parent=67 // pred_fallthru
          _
      $region68: #{tpu_custom_call.1} parent=5 // pred_fallthru
        _
    $region6: #{tpu_custom_call.1} parent=1 // loop_footer
      %s23 = sadd.s32 1, %s19
    $region7: #{tpu_custom_call.1} parent=1 // loop_footer_branch
      %18 = sbr.rel target = $region3
    $region8: #{tpu_custom_call.1} parent=1 // loop_exit
      _
    %1718 = vsyncpa [#allocation3], 1
    %s1719 = scalar_lea.sflag [#allocation3], 1
    %1720 = vsyncpa %s1719, 1

</llo_original>
